<compile_context>
chip_gen: v6e
topology: v6e:2x2x1
jax: 0.10.0
libtpu: 0.0.40
codegen_flags: <defaults>
</compile_context>

<pallas_src>
import jax
import jax.numpy as jnp
from jax.experimental import pallas as pl
from jax.experimental.pallas import tpu as pltpu


# ----------------------------------------------------------------------------
# Helpers
# ----------------------------------------------------------------------------
def _physical_vmem_bytes():
    try:
        info = pltpu.get_tpu_info()
        return int(getattr(info, "vmem_capacity_bytes", 64 * 1024 * 1024))
    except Exception:
        return 64 * 1024 * 1024


def _pick_channel_tile(c):
    """Output-channel tile: full Cout when small, else a 128-multiple divisor."""
    if c <= 256:
        return c
    for t in (256, 128):
        if c % t == 0:
            return t
    return c


# ----------------------------------------------------------------------------
# Fused stage kernel:
#   in-VMEM reflect pad -> 3x3 conv (single im2col matmul) -> InstanceNorm
#   -> optional (1x1 conv + IN | identity) shortcut add -> LeakyReLU
# ----------------------------------------------------------------------------
def _make_stage_kernel(*, h, wd, eps, slope, shortcut_mode, apply_act, compute_dtype):
    hw = h * wd

    def conv3x3(x, w_mat):
        # x: (H, W, Cin) in compute dtype. Reflect halo built in VMEM.
        cin = x.shape[-1]
        xh = jnp.concatenate([x[1:2], x, x[h - 2:h - 1]], axis=0)          # (H+2, W, C)
        # Hoist dx shifts: 3 width-shifted slabs, reused for all 3 dy offsets.
        sh_l = jnp.concatenate([xh[:, 1:2, :], xh[:, :wd - 1, :]], axis=1)
        sh_r = jnp.concatenate([xh[:, 1:wd, :], xh[:, wd - 2:wd - 1, :]], axis=1)
        shifts = (sh_l, xh, sh_r)
        cols = [shifts[dx][dy:dy + h].reshape(hw, cin)
                for dy in range(3) for dx in range(3)]                      # t = dy*3+dx
        col = jnp.concatenate(cols, axis=-1)                                # (H*W, 9*Cin)
        # One wide-contraction MXU matmul, f32 accumulation.
        return jnp.dot(col, w_mat, preferred_element_type=jnp.float32)

    def inorm(y, p):
        # y: (H*W, C) f32; p: (2, C) = [gamma, beta].  Biased variance (/HW),
        # gamma folded into the rsqrt scale -> one full-slab FMA.
        # (The conv bias cancels exactly under the mean subtraction -> omitted.)
        mu = jnp.mean(y, axis=0, keepdims=True)
        c = y - mu
        var = jnp.mean(c * c, axis=0, keepdims=True)
        scale = p[0:1, :] * jax.lax.rsqrt(var + jnp.float32(eps))
        return c * scale + p[1:2, :]

    def kernel(*refs):
        if shortcut_mode == "conv":
            x_ref, w_ref, p_ref, xs_ref, ws_ref, ps_ref, o_ref = refs
        elif shortcut_mode == "identity":
            x_ref, w_ref, p_ref, r_ref, o_ref = refs
        else:
            x_ref, w_ref, p_ref, o_ref = refs

        acc = inorm(conv3x3(x_ref[0].astype(compute_dtype), w_ref[...]), p_ref[...])

        if shortcut_mode == "conv":
            cin_sc = xs_ref.shape[-1]
            xs = xs_ref[0].reshape(hw, cin_sc).astype(compute_dtype)
            sc = jnp.dot(xs, ws_ref[...], preferred_element_type=jnp.float32)
            acc = acc + inorm(sc, ps_ref[...])
        elif shortcut_mode == "identity":
            acc = acc + r_ref[0].reshape(hw, r_ref.shape[-1]).astype(jnp.float32)

        if apply_act:
            acc = jnp.maximum(acc, jnp.float32(slope) * acc)                # LeakyReLU

        o_ref[0] = acc.reshape(h, wd, o_ref.shape[-1]).astype(o_ref.dtype)

    return kernel


def fused_conv_stage(x, w_mat, gamma, beta, *, eps=1e-5, slope=0.01,
                     apply_act=True, shortcut=None,
                     compute_dtype=jnp.float32, out_dtype=None):
    """One fused StackConvBlock stage.

    x:      (N, H, W, Cin) NHWC
    w_mat:  (9*Cin, Cout)  im2col-ordered 3x3 weights (tap-major, t = dy*3+dx)
    gamma, beta: (Cout,)   InstanceNorm affine params
    shortcut: None
            | ("identity", res_nhwc)                       # res: (N, H, W, Cout)
            | ("conv", sc_x_nhwc, w_sc_(Cin_sc,Cout), g_sc, b_sc)
    """
    n, h, wd, cin = x.shape
    k2cin, cout = w_mat.shape
    assert k2cin == 9 * cin
    assert h >= 2 and wd >= 2, "reflect padding requires H, W >= 2"
    out_dtype = x.dtype if out_dtype is None else out_dtype

    tc = _pick_channel_tile(cout)
    nct = cout // tc
    mode = "none" if shortcut is None else shortcut[0]

    params = jnp.stack([gamma, beta], axis=0).astype(jnp.float32)           # (2, Cout)

    in_specs = [
        pl.BlockSpec((1, h, wd, cin), lambda i, j: (i, 0, 0, 0)),
        pl.BlockSpec((k2cin, tc), lambda i, j: (0, j)),
        pl.BlockSpec((2, tc), lambda i, j: (0, j)),
    ]
    args = [x, w_mat.astype(compute_dtype), params]

    flops = 2 * n * h * wd * k2cin * cout
    bytes_accessed = (x.size * x.dtype.itemsize
                      + w_mat.size * jnp.dtype(compute_dtype).itemsize
                      + params.size * 4
                      + n * h * wd * cout * jnp.dtype(out_dtype).itemsize)

    if mode == "conv":
        _, sc_x, sc_w, sc_g, sc_b = shortcut
        cin_sc = sc_x.shape[-1]
        sc_params = jnp.stack([sc_g, sc_b], axis=0).astype(jnp.float32)
        in_specs += [
            pl.BlockSpec((1, h, wd, cin_sc), lambda i, j: (i, 0, 0, 0)),
            pl.BlockSpec((cin_sc, tc), lambda i, j: (0, j)),
            pl.BlockSpec((2, tc), lambda i, j: (0, j)),
        ]
        args += [sc_x, sc_w.astype(compute_dtype), sc_params]
        flops += 2 * n * h * wd * cin_sc * cout
        bytes_accessed += (sc_x.size * sc_x.dtype.itemsize
                           + sc_w.size * jnp.dtype(compute_dtype).itemsize
                           + sc_params.size * 4)
    elif mode == "identity":
        _, res = shortcut
        assert res.shape == (n, h, wd, cout)
        in_specs += [pl.BlockSpec((1, h, wd, tc), lambda i, j: (i, 0, 0, j))]
        args += [res]
        bytes_accessed += res.size * res.dtype.itemsize

    kernel = _make_stage_kernel(h=h, wd=wd, eps=eps, slope=slope,
                                shortcut_mode=mode, apply_act=apply_act,
                                compute_dtype=compute_dtype)

    # VMEM budget: ~75% of the physical capacity of the current generation
    # (128 MiB on v5e/v6e, 64 MiB on v7x), never below 32 MiB.
    vmem_limit = max(32 * 1024 * 1024, _physical_vmem_bytes() * 3 // 4)

    return pl.pallas_call(
        kernel,
        out_shape=jax.ShapeDtypeStruct((n, h, wd, cout), out_dtype),
        grid_spec=pltpu.PrefetchScalarGridSpec(
            num_scalar_prefetch=0,
            grid=(n, nct),
            in_specs=in_specs,
            out_specs=pl.BlockSpec((1, h, wd, tc), lambda i, j: (i, 0, 0, j)),
        ),
        compiler_params=pltpu.CompilerParams(
            dimension_semantics=("parallel", "parallel"),
            vmem_limit_bytes=int(vmem_limit),
        ),
        cost_estimate=pl.CostEstimate(flops=int(flops),
                                      transcendentals=int(n * cout),
                                      bytes_accessed=int(bytes_accessed)),
    )(*args)


# ----------------------------------------------------------------------------
# StackConvBlock forward (Pallas)
# ----------------------------------------------------------------------------
def stack_conv_block(x_nchw, params, *, residualskip=False, eps=1e-5,
                     slope=0.01, compute_dtype=jnp.float32):
    """Pallas forward of StackConvBlock (2-D, stride=1, padding='same').

    x_nchw: (N, Cin, H, W).  Returns (N, Cout, H, W).
    """
    # TODO(synk): the NCHW<->NHWC transposes below are wrapper-side HBM passes;
    # keeping the surrounding model channels-last would remove them.
    x = jnp.transpose(x_nchw, (0, 2, 3, 1)).astype(jnp.float32)             # NHWC
    n, h, wd, cin = x.shape
    cmid = params["w1"].shape[-1]
    cout = params["w2"].shape[-1]
    change_dimension = cin != cout

    w1 = params["w1"].reshape(9 * cin, cmid)
    w2 = params["w2"].reshape(9 * cmid, cout)

    # Stage 1: conv1 (3x3 reflect) + norm1 + LeakyReLU.
    o_c1 = fused_conv_stage(x, w1, params["g1"], params["bt1"],
                            eps=eps, slope=slope, apply_act=True,
                            compute_dtype=compute_dtype, out_dtype=compute_dtype)

    # Stage 2: conv2 (3x3 reflect) + norm2 + fused shortcut + LeakyReLU.
    if residualskip and change_dimension:
        shortcut = ("conv", x, params["w_sc"].reshape(cin, cout),
                    params["g0"], params["bt0"])
    elif residualskip:
        shortcut = ("identity", x)
    else:
        shortcut = None

    out = fused_conv_stage(o_c1, w2, params["g2"], params["bt2"],
                           eps=eps, slope=slope, apply_act=True,
                           shortcut=shortcut,
                           compute_dtype=compute_dtype, out_dtype=jnp.float32)

    return jnp.transpose(out, (0, 3, 1, 2)).astype(x_nchw.dtype)


# ----------------------------------------------------------------------------
# Pure-JAX reference (for sanity checking)
# ----------------------------------------------------------------------------
def _conv2d_ref(x_nhwc, w_taps, bias, ksize):
    pad = ksize // 2
    xp = x_nhwc
    if pad:
        xp = jnp.pad(x_nhwc, ((0, 0), (pad, pad), (pad, pad), (0, 0)),
                     mode="reflect")
    n, hp, wp, cin = xp.shape
    h, wsp = hp - 2 * pad, wp - 2 * pad
    cout = w_taps.shape[-1]
    out = jnp.zeros((n, h, wsp, cout), jnp.float32)
    for t in range(ksize * ksize):
        dy, dx = divmod(t, ksize)
        xs = xp[:, dy:dy + h, dx:dx + wsp, :]
        out = out + jnp.einsum("nhwc,co->nhwo", xs, w_taps[t])
    return out + bias


def _instance_norm_ref(y, gamma, beta, eps):
    mu = jnp.mean(y, axis=(1, 2), keepdims=True)
    var = jnp.mean(jnp.square(y - mu), axis=(1, 2), keepdims=True)
    return (y - mu) * jax.lax.rsqrt(var + eps) * gamma + beta


def _leaky(y, slope):
    return jnp.maximum(y, slope * y)


def stack_conv_block_ref(x_nchw, params, *, residualskip=False, eps=1e-5, slope=0.01):
    x = jnp.transpose(x_nchw, (0, 2, 3, 1)).astype(jnp.float32)
    cin = x.shape[-1]
    cout = params["w2"].shape[-1]
    if residualskip and cin != cout:
        sc = _instance_norm_ref(_conv2d_ref(x, params["w_sc"], params["b_sc"], 1),
                                params["g0"], params["bt0"], eps)
    else:
        sc = x
    o1 = _leaky(_instance_norm_ref(_conv2d_ref(x, params["w1"], params["b1"], 3),
                                   params["g1"], params["bt1"], eps), slope)
    o2 = _instance_norm_ref(_conv2d_ref(o1, params["w2"], params["b2"], 3),
                            params["g2"], params["bt2"], eps)
    out = _leaky(o2 + sc, slope) if residualskip else _leaky(o2, slope)
    return jnp.transpose(out, (0, 3, 1, 2)).astype(x_nchw.dtype)


# ----------------------------------------------------------------------------
# Demo
# ----------------------------------------------------------------------------
if __name__ == "__main__":
    N, CIN, H, W = 2, 4, 16, 16
    COUT = 8          # out_channels == mid_channels (module default mid=None)
    K = 3

    keys = jax.random.split(jax.random.PRNGKey(0), 22)

    def _n(k, shape, scale=1.0):
        return scale * jax.random.normal(k, shape, dtype=jnp.float32)

    x = jax.random.normal(keys[0], (N, CIN, H, W), dtype=jnp.float32)

    params = {
        # 1x1 shortcut conv + norm0 (used when residualskip and Cin != Cout)
        "w_sc": _n(keys[1], (1, CIN, COUT), 0.30),
        "b_sc": _n(keys[2], (COUT,), 0.10),
        "g0":   1.0 + _n(keys[3], (COUT,), 0.10),
        "bt0":  _n(keys[4], (COUT,), 0.10),
        # conv1 (3x3 reflect) + norm1 + LeakyReLU
        "w1":   _n(keys[5], (K * K, CIN, COUT), 0.25),
        "b1":   _n(keys[6], (COUT,), 0.10),
        "g1":   1.0 + _n(keys[7], (COUT,), 0.10),
        "bt1":  _n(keys[8], (COUT,), 0.10),
        # conv2 (3x3 reflect) + norm2 (+ residual) + LeakyReLU
        "w2":   _n(keys[9], (K * K, COUT, COUT), 0.25),
        "b2":   _n(keys[10], (COUT,), 0.10),
        "g2":   1.0 + _n(keys[11], (COUT,), 0.10),
        "bt2":  _n(keys[12], (COUT,), 0.10),
    }

    # 1) residualskip=True, Cin != Cout -> fused 1x1-conv shortcut path.
    out = jax.block_until_ready(stack_conv_block(x, params, residualskip=True))
    assert out.shape == (N, COUT, H, W) and out.dtype == x.dtype
    assert bool(jnp.all(jnp.isfinite(out)))
    ref = stack_conv_block_ref(x, params, residualskip=True)
    err = float(jnp.max(jnp.abs(out - ref)))
    assert err < 1e-2, f"residual-conv path mismatch: {err}"

    # 2) residualskip=False path (LeakyReLU still applied after norm2, per module).
    out2 = jax.block_until_ready(stack_conv_block(x, params, residualskip=False))
    ref2 = stack_conv_block_ref(x, params, residualskip=False)
    err2 = float(jnp.max(jnp.abs(out2 - ref2)))
    assert err2 < 1e-2, f"no-residual path mismatch: {err2}"

    # 3) residualskip=True, Cin == Cout -> identity shortcut path.
    x3 = jax.random.normal(keys[13], (N, COUT, H, W), dtype=jnp.float32)
    params_id = {
        "w1":  _n(keys[14], (K * K, COUT, COUT), 0.25),
        "b1":  _n(keys[15], (COUT,), 0.10),
        "g1":  1.0 + _n(keys[16], (COUT,), 0.10),
        "bt1": _n(keys[17], (COUT,), 0.10),
        "w2":  _n(keys[18], (K * K, COUT, COUT), 0.25),
        "b2":  _n(keys[19], (COUT,), 0.10),
        "g2":  1.0 + _n(keys[20], (COUT,), 0.10),
        "bt2": _n(keys[21], (COUT,), 0.10),
    }
    out3 = jax.block_until_ready(stack_conv_block(x3, params_id, residualskip=True))
    ref3 = stack_conv_block_ref(x3, params_id, residualskip=True)
    err3 = float(jnp.max(jnp.abs(out3 - ref3)))
    assert err3 < 1e-2, f"identity-residual path mismatch: {err3}"

    print("KERNEL_OK")
</pallas_src>

<mosaic_0001>
module attributes {stable_mosaic.version = 11 : i64} {
  func.func @kernel(%arg0: i32, %arg1: i32, %arg2: memref<1x16x16x4xf32, #tpu.memory_space<vmem>>, %arg3: memref<36x8xf32, #tpu.memory_space<vmem>>, %arg4: memref<2x8xf32, #tpu.memory_space<vmem>>, %arg5: memref<1x16x16x8xf32, #tpu.memory_space<vmem>>) attributes {dimension_semantics = [#tpu.dimension_semantics<parallel>, #tpu.dimension_semantics<parallel>], iteration_bounds = array<i64: 2, 1>, scalar_prefetch = 0 : i64, scratch_operands = 0 : i64, tpu.core_type = #tpu.core_type<tc>, window_params = [{transform_indices = @transform_0, window_bounds = array<i64: 1, 16, 16, 4>}, {transform_indices = @transform_1, window_bounds = array<i64: 36, 8>}, {transform_indices = @transform_2, window_bounds = array<i64: 2, 8>}, {transform_indices = @transform_3, window_bounds = array<i64: 1, 16, 16, 8>}]} {
    %c0 = arith.constant 0 : index
    %c0_0 = arith.constant 0 : index
    %c0_1 = arith.constant 0 : index
    %c0_2 = arith.constant 0 : index
    %0 = vector.load %arg2[%c0, %c0_0, %c0_1, %c0_2] : memref<1x16x16x4xf32, #tpu.memory_space<vmem>>, vector<1x16x16x4xf32>
    %1 = vector.shape_cast %0 : vector<1x16x16x4xf32> to vector<16x16x4xf32>
    %c0_3 = arith.constant 0 : index
    %c0_4 = arith.constant 0 : index
    %2 = vector.load %arg3[%c0_3, %c0_4] : memref<36x8xf32, #tpu.memory_space<vmem>>, vector<36x8xf32>
    %3 = vector.extract_strided_slice %1 {offsets = [1, 0, 0], sizes = [1, 16, 4], strides = [1, 1, 1]} : vector<16x16x4xf32> to vector<1x16x4xf32>
    %4 = vector.extract_strided_slice %1 {offsets = [14, 0, 0], sizes = [1, 16, 4], strides = [1, 1, 1]} : vector<16x16x4xf32> to vector<1x16x4xf32>
    %5 = tpu.concatenate %3, %1, %4 in 0 : vector<1x16x4xf32>, vector<16x16x4xf32>, vector<1x16x4xf32> -> vector<18x16x4xf32>
    %6 = vector.extract_strided_slice %5 {offsets = [0, 1, 0], sizes = [18, 1, 4], strides = [1, 1, 1]} : vector<18x16x4xf32> to vector<18x1x4xf32>
    %7 = vector.extract_strided_slice %5 {offsets = [0, 0, 0], sizes = [18, 15, 4], strides = [1, 1, 1]} : vector<18x16x4xf32> to vector<18x15x4xf32>
    %8 = tpu.concatenate %6, %7 in 1 : vector<18x1x4xf32>, vector<18x15x4xf32> -> vector<18x16x4xf32>
    %9 = vector.extract_strided_slice %5 {offsets = [0, 1, 0], sizes = [18, 15, 4], strides = [1, 1, 1]} : vector<18x16x4xf32> to vector<18x15x4xf32>
    %10 = vector.extract_strided_slice %5 {offsets = [0, 14, 0], sizes = [18, 1, 4], strides = [1, 1, 1]} : vector<18x16x4xf32> to vector<18x1x4xf32>
    %11 = tpu.concatenate %9, %10 in 1 : vector<18x15x4xf32>, vector<18x1x4xf32> -> vector<18x16x4xf32>
    %12 = vector.extract_strided_slice %8 {offsets = [0, 0, 0], sizes = [16, 16, 4], strides = [1, 1, 1]} : vector<18x16x4xf32> to vector<16x16x4xf32>
    %13 = vector.shape_cast %12 : vector<16x16x4xf32> to vector<256x4xf32>
    %14 = vector.extract_strided_slice %5 {offsets = [0, 0, 0], sizes = [16, 16, 4], strides = [1, 1, 1]} : vector<18x16x4xf32> to vector<16x16x4xf32>
    %15 = vector.shape_cast %14 : vector<16x16x4xf32> to vector<256x4xf32>
    %16 = vector.extract_strided_slice %11 {offsets = [0, 0, 0], sizes = [16, 16, 4], strides = [1, 1, 1]} : vector<18x16x4xf32> to vector<16x16x4xf32>
    %17 = vector.shape_cast %16 : vector<16x16x4xf32> to vector<256x4xf32>
    %18 = vector.extract_strided_slice %8 {offsets = [1, 0, 0], sizes = [16, 16, 4], strides = [1, 1, 1]} : vector<18x16x4xf32> to vector<16x16x4xf32>
    %19 = vector.shape_cast %18 : vector<16x16x4xf32> to vector<256x4xf32>
    %20 = vector.extract_strided_slice %5 {offsets = [1, 0, 0], sizes = [16, 16, 4], strides = [1, 1, 1]} : vector<18x16x4xf32> to vector<16x16x4xf32>
    %21 = vector.shape_cast %20 : vector<16x16x4xf32> to vector<256x4xf32>
    %22 = vector.extract_strided_slice %11 {offsets = [1, 0, 0], sizes = [16, 16, 4], strides = [1, 1, 1]} : vector<18x16x4xf32> to vector<16x16x4xf32>
    %23 = vector.shape_cast %22 : vector<16x16x4xf32> to vector<256x4xf32>
    %24 = vector.extract_strided_slice %8 {offsets = [2, 0, 0], sizes = [16, 16, 4], strides = [1, 1, 1]} : vector<18x16x4xf32> to vector<16x16x4xf32>
    %25 = vector.shape_cast %24 : vector<16x16x4xf32> to vector<256x4xf32>
    %26 = vector.extract_strided_slice %5 {offsets = [2, 0, 0], sizes = [16, 16, 4], strides = [1, 1, 1]} : vector<18x16x4xf32> to vector<16x16x4xf32>
    %27 = vector.shape_cast %26 : vector<16x16x4xf32> to vector<256x4xf32>
    %28 = vector.extract_strided_slice %11 {offsets = [2, 0, 0], sizes = [16, 16, 4], strides = [1, 1, 1]} : vector<18x16x4xf32> to vector<16x16x4xf32>
    %29 = vector.shape_cast %28 : vector<16x16x4xf32> to vector<256x4xf32>
    %30 = tpu.concatenate %13, %15, %17, %19, %21, %23, %25, %27, %29 in 1 : vector<256x4xf32>, vector<256x4xf32>, vector<256x4xf32>, vector<256x4xf32>, vector<256x4xf32>, vector<256x4xf32>, vector<256x4xf32>, vector<256x4xf32>, vector<256x4xf32> -> vector<256x36xf32>
    %cst = arith.constant dense<0.000000e+00> : vector<256x8xf32>
    %31 = tpu.matmul %30, %2, %cst {dimension_numbers = #tpu.dot_dimension_numbers<[1], [0], [0], [1], [0, 0, 1, 1], [], []>} : vector<256x36xf32>, vector<36x8xf32>, vector<256x8xf32> -> vector<256x8xf32>
    %c0_5 = arith.constant 0 : index
    %c0_6 = arith.constant 0 : index
    %32 = vector.load %arg4[%c0_5, %c0_6] : memref<2x8xf32, #tpu.memory_space<vmem>>, vector<2x8xf32>
    %cst_7 = arith.constant dense<0.000000e+00> : vector<8xf32>
    %33 = vector.multi_reduction <add>, %31, %cst_7 [0] : vector<256x8xf32> to vector<8xf32>
    %34 = vector.shape_cast %33 : vector<8xf32> to vector<1x8xf32>
    %cst_8 = arith.constant 2.560000e+02 : f32
    %35 = vector.broadcast %cst_8 : f32 to vector<1x8xf32>
    %36 = arith.divf %34, %35 : vector<1x8xf32>
    %37 = vector.broadcast %36 : vector<1x8xf32> to vector<256x8xf32>
    %38 = arith.subf %31, %37 : vector<256x8xf32>
    %39 = arith.mulf %38, %38 : vector<256x8xf32>
    %cst_9 = arith.constant dense<0.000000e+00> : vector<8xf32>
    %40 = vector.multi_reduction <add>, %39, %cst_9 [0] : vector<256x8xf32> to vector<8xf32>
    %41 = vector.shape_cast %40 : vector<8xf32> to vector<1x8xf32>
    %cst_10 = arith.constant 2.560000e+02 : f32
    %42 = vector.broadcast %cst_10 : f32 to vector<1x8xf32>
    %43 = arith.divf %41, %42 : vector<1x8xf32>
    %44 = vector.extract_strided_slice %32 {offsets = [0, 0], sizes = [1, 8], strides = [1, 1]} : vector<2x8xf32> to vector<1x8xf32>
    %cst_11 = arith.constant 9.99999974E-6 : f32
    %45 = vector.broadcast %cst_11 : f32 to vector<1x8xf32>
    %46 = arith.addf %43, %45 : vector<1x8xf32>
    %47 = math.rsqrt %46 : vector<1x8xf32>
    %48 = arith.mulf %44, %47 : vector<1x8xf32>
    %49 = vector.broadcast %48 : vector<1x8xf32> to vector<256x8xf32>
    %50 = arith.mulf %38, %49 : vector<256x8xf32>
    %51 = vector.extract_strided_slice %32 {offsets = [1, 0], sizes = [1, 8], strides = [1, 1]} : vector<2x8xf32> to vector<1x8xf32>
    %52 = vector.broadcast %51 : vector<1x8xf32> to vector<256x8xf32>
    %53 = arith.addf %50, %52 : vector<256x8xf32>
    %cst_12 = arith.constant 0.00999999977 : f32
    %54 = vector.broadcast %cst_12 : f32 to vector<256x8xf32>
    %55 = arith.mulf %54, %53 : vector<256x8xf32>
    %56 = arith.maximumf %53, %55 : vector<256x8xf32>
    %57 = vector.shape_cast %56 : vector<256x8xf32> to vector<16x16x8xf32>
    %c0_13 = arith.constant 0 : index
    %c0_14 = arith.constant 0 : index
    %c0_15 = arith.constant 0 : index
    %c0_16 = arith.constant 0 : index
    %58 = vector.load %arg5[%c0_13, %c0_14, %c0_15, %c0_16] : memref<1x16x16x8xf32, #tpu.memory_space<vmem>>, vector<1x16x16x8xf32>
    %59 = vector.shape_cast %58 : vector<1x16x16x8xf32> to vector<16x16x8xf32>
    %60 = vector.shape_cast %57 : vector<16x16x8xf32> to vector<1x16x16x8xf32>
    tpu.vector_store %arg5[%c0_13, %c0_14, %c0_15, %c0_16], %60 {strides = array<i32>} : memref<1x16x16x8xf32, #tpu.memory_space<vmem>>, vector<1x16x16x8xf32>,
    return
  }
  func.func @transform_0(%arg0: i32, %arg1: i32) -> (i32, i32, i32, i32) {
    %c0_i32 = arith.constant 0 : i32
    %c0_i32_0 = arith.constant 0 : i32
    %c0_i32_1 = arith.constant 0 : i32
    %c0_i32_2 = arith.constant 0 : i32
    return %arg0, %c0_i32, %c0_i32_0, %c0_i32_1 : i32, i32, i32, i32
  }
  func.func @transform_1(%arg0: i32, %arg1: i32) -> (i32, i32) {
    %c0_i32 = arith.constant 0 : i32
    %c0_i32_0 = arith.constant 0 : i32
    return %c0_i32, %arg1 : i32, i32
  }
  func.func @transform_2(%arg0: i32, %arg1: i32) -> (i32, i32) {
    %c0_i32 = arith.constant 0 : i32
    %c0_i32_0 = arith.constant 0 : i32
    return %c0_i32, %arg1 : i32, i32
  }
  func.func @transform_3(%arg0: i32, %arg1: i32) -> (i32, i32, i32, i32) {
    %c0_i32 = arith.constant 0 : i32
    %c0_i32_0 = arith.constant 0 : i32
    %c0_i32_1 = arith.constant 0 : i32
    return %arg0, %c0_i32, %c0_i32_0, %arg1 : i32, i32, i32, i32
  }
}

</mosaic_0001>

<llo_original>
// kernel: tpu_custom_call.1
$region0: #{tpu_custom_call.1}
  #allocation0 [shape = 'u32[]', space=smem, size = 0x4, offset = 0x4, fixed_abs, tag = 'smem constant byte address 0x4 - core index']
  #allocation1 [shape = 'u32[144,128]{1,0:T(1,128)}', space=vmem, size = 0x12000, scoped, tag = 'internal scratch']
  %s0 = inlined_call_operand.vmem [shape: f32[2,16,16,4], index: 0, kind: input, shape index: {}]
  %s1 = inlined_call_operand.vmem [shape: f32[36,8], index: 1, kind: input, shape index: {}]
  %s2 = inlined_call_operand.vmem [shape: f32[2,8], index: 2, kind: input, shape index: {}]
  %s3 = inlined_call_operand.vmem [shape: f32[2,16,16,8], index: 3, kind: output, shape index: {}]
  %s4 = sld [smem:[#allocation0]]
  $region45: #{tpu_custom_call.1} parent=0
    _
  %s6 = ssub.s32 1, %s4
  %s7 = scalar_select 0, %s6, %s4
  loop: start=0, step=1, limit=4
  $region2: #{tpu_custom_call.1} parent=0 // loop_pre_header
    _
  $region3: #{tpu_custom_call.1} parent=0 // loop_header
    %s9 = sphi 0, %s13
    %p10 = scmp.ge.s32.totalorder %s9, 4
    %s16 = sphi 0, %s28
    %s17 = sphi 0, %s24
    %s18 = sphi 0, %s16
    %s19 = sphi 0, %s17
    %s20 = sphi 0, %s18
    %s21 = sphi 0, %s19
    %s31 = sphi 0, %s33
    %s34 = sphi 0, %s31
    %s35 = sphi 0, %s34
    %s51 = sphi 0, %s35
    %s57 = sphi 0, %s59
    %s60 = sphi 0, %s57
    %s61 = sphi 0, %s60
    %s77 = sphi 0, %s61
    %s83 = sphi 0, %s85
    %s86 = sphi 0, %s83
    %s87 = sphi 0, %s86
    %s103 = sphi 0, %s87
    %s111 = sphi 0, %s113
    %s114 = sphi 0, %s111
    %s115 = sphi 0, %s114
    %s131 = sphi 0, %s115
  $region4: #{tpu_custom_call.1} parent=0 // loop_header_branch
    %12 = sbr.rel (%p10) target = $region8
  $region5: #{tpu_custom_call.1} parent=0 // loop_body
    %s14 = ssub.s32 %s9, 1
    %s15 = ssub.s32 %s9, 2
    %s22 = sadd.s32 1, %s17
    %p23 = scmp.ge.s32.totalorder %s22, 1
    %s24 = scalar_select %p23, 0, %s22
    %s25 = sadd.s32 1, %s16
    %s26 = scalar_select %p23, %s25, %s16
    %p27 = scmp.ge.s32.totalorder %s26, 2
    %s28 = scalar_select %p27, 0, %s26
    %s29 = ssub.s32 %s16, %s28
    %p30 = scmp.eq.s32.totalorder %s29, 0
    %s32 = sadd.s32 %s31, 1
    %s33 = scalar_select %p30, %s31, %s32
    %p36 = pneg %p30
    %p37 = scmp.eq.s32.totalorder %s9, 1
    %p38 = por %p36, %p37
    %p39 = scmp.ne.s32.totalorder %s31, %s34
    %p40 = scmp.eq.s32.totalorder %s9, 0
    %p41 = por %p39, %p40
    %p42 = scmp.ne.s32.totalorder %s31, %s34
    %p43 = scmp.eq.s32.totalorder %s14, 1
    %p44 = por %p42, %p43
    %p45 = scmp.ne.s32.totalorder %s34, %s35
    %p46 = scmp.eq.s32.totalorder %s14, 0
    %p47 = por %p45, %p46
    %p48 = scmp.ne.s32.totalorder %s34, %s35
    %p49 = scmp.eq.s32.totalorder %s15, 1
    %p50 = por %p48, %p49
    %p52 = scmp.ne.s32.totalorder %s35, %s51
    %p53 = scmp.eq.s32.totalorder %s15, 0
    %p54 = por %p52, %p53
    %s55 = ssub.s32 %s17, %s24
    %p56 = scmp.eq.s32.totalorder %s55, 0
    %s58 = sadd.s32 %s57, 1
    %s59 = scalar_select %p56, %s57, %s58
    %p62 = pneg %p56
    %p63 = scmp.eq.s32.totalorder %s9, 1
    %p64 = por %p62, %p63
    %p65 = scmp.ne.s32.totalorder %s57, %s60
    %p66 = scmp.eq.s32.totalorder %s9, 0
    %p67 = por %p65, %p66
    %p68 = scmp.ne.s32.totalorder %s57, %s60
    %p69 = scmp.eq.s32.totalorder %s14, 1
    %p70 = por %p68, %p69
    %p71 = scmp.ne.s32.totalorder %s60, %s61
    %p72 = scmp.eq.s32.totalorder %s14, 0
    %p73 = por %p71, %p72
    %p74 = scmp.ne.s32.totalorder %s60, %s61
    %p75 = scmp.eq.s32.totalorder %s15, 1
    %p76 = por %p74, %p75
    %p78 = scmp.ne.s32.totalorder %s61, %s77
    %p79 = scmp.eq.s32.totalorder %s15, 0
    %p80 = por %p78, %p79
    %s81 = ssub.s32 %s17, %s24
    %p82 = scmp.eq.s32.totalorder %s81, 0
    %s84 = sadd.s32 %s83, 1
    %s85 = scalar_select %p82, %s83, %s84
    %p88 = pneg %p82
    %p89 = scmp.eq.s32.totalorder %s9, 1
    %p90 = por %p88, %p89
    %p91 = scmp.ne.s32.totalorder %s83, %s86
    %p92 = scmp.eq.s32.totalorder %s9, 0
    %p93 = por %p91, %p92
    %p94 = scmp.ne.s32.totalorder %s83, %s86
    %p95 = scmp.eq.s32.totalorder %s14, 1
    %p96 = por %p94, %p95
    %p97 = scmp.ne.s32.totalorder %s86, %s87
    %p98 = scmp.eq.s32.totalorder %s14, 0
    %p99 = por %p97, %p98
    %p100 = scmp.ne.s32.totalorder %s86, %s87
    %p101 = scmp.eq.s32.totalorder %s15, 1
    %p102 = por %p100, %p101
    %p104 = scmp.ne.s32.totalorder %s87, %s103
    %p105 = scmp.eq.s32.totalorder %s15, 0
    %p106 = por %p104, %p105
    %s107 = ssub.s32 %s16, %s28
    %s108 = ssub.s32 %s17, %s24
    %s109 = sor.u32 %s107, %s108
    %p110 = scmp.eq.s32.totalorder %s109, 0
    %s112 = sadd.s32 %s111, 1
    %s113 = scalar_select %p110, %s111, %s112
    %p116 = pneg %p110
    %p117 = scmp.eq.s32.totalorder %s9, 1
    %p118 = por %p116, %p117
    %p119 = scmp.ne.s32.totalorder %s111, %s114
    %p120 = scmp.eq.s32.totalorder %s9, 0
    %p121 = por %p119, %p120
    %p122 = scmp.ne.s32.totalorder %s111, %s114
    %p123 = scmp.eq.s32.totalorder %s14, 1
    %p124 = por %p122, %p123
    %p125 = scmp.ne.s32.totalorder %s114, %s115
    %p126 = scmp.eq.s32.totalorder %s14, 0
    %p127 = por %p125, %p126
    %p128 = scmp.ne.s32.totalorder %s114, %s115
    %p129 = scmp.eq.s32.totalorder %s15, 1
    %p130 = por %p128, %p129
    %p132 = scmp.ne.s32.totalorder %s115, %s131
    %p133 = scmp.eq.s32.totalorder %s15, 0
    %p134 = por %p132, %p133
    %p135 = scmp.le.s32.totalorder 1, %s9
    %p136 = scmp.lt.s32.totalorder %s9, 3
    %p137 = pnand %p135, %p136
    %p138 = pneg %p137
    // Predicated region
    $region9: #{tpu_custom_call.1} parent=5 // pred_check
      _
    $region10: #{tpu_custom_call.1} parent=5 // pred_check_branch
      %140 = sbr.rel (%p137) target = $region12
    $region11: #{tpu_custom_call.1} parent=5 // pred_region
      %s141 = ssub.s32 %s9, 1
      // Predicated region
      $region13: #{tpu_custom_call.1} parent=11 // pred_check
        %p142 = pneg %p73
      $region14: #{tpu_custom_call.1} parent=11 // pred_check_branch
        %144 = sbr.rel (%p142) target = $region16
      $region15: #{tpu_custom_call.1} parent=11 // pred_region
        %p145 = scmp.lt.s32.totalorder %s19, 0
        %s146 = scalar_select %p145, %s19, 0
        %s147 = smul.addr %s146, 8
        %s148 = scalar_lea.vmem %s1, %s147
      $region16: #{tpu_custom_call.1} parent=11 // pred_fallthru
        _
      // Predicated region
      $region17: #{tpu_custom_call.1} parent=11 // pred_check
        %p149 = pneg %p99
      $region18: #{tpu_custom_call.1} parent=11 // pred_check_branch
        %151 = sbr.rel (%p149) target = $region20
      $region19: #{tpu_custom_call.1} parent=11 // pred_region
        %p152 = scmp.lt.s32.totalorder %s19, 0
        %s153 = scalar_select %p152, %s19, 0
        %s154 = smul.addr %s153, 2
        %s155 = scalar_lea.vmem %s2, %s154
      $region20: #{tpu_custom_call.1} parent=11 // pred_fallthru
        _
    $region12: #{tpu_custom_call.1} parent=5 // pred_fallthru
      _
    %p156 = scmp.lt.s32.totalorder %s9, 2
    // Predicated region
    $region21: #{tpu_custom_call.1} parent=5 // pred_check
      %p157 = pneg %p156
    $region22: #{tpu_custom_call.1} parent=5 // pred_check_branch
      %159 = sbr.rel (%p157) target = $region24
    $region23: #{tpu_custom_call.1} parent=5 // pred_region
      // Predicated region
      $region25: #{tpu_custom_call.1} parent=23 // pred_check
        %p160 = pneg %p41
      $region26: #{tpu_custom_call.1} parent=23 // pred_check_branch
        %162 = sbr.rel (%p160) target = $region28
      $region27: #{tpu_custom_call.1} parent=23 // pred_region
        %p163 = scmp.lt.s32.totalorder %s16, 1
        %s164 = scalar_select %p163, %s16, 1
        %s165 = smul.addr %s164, 32
        %s166 = smul.addr %s165, 8
        %s167 = scalar_lea.vmem %s0, %s166
      $region28: #{tpu_custom_call.1} parent=23 // pred_fallthru
        _
    $region24: #{tpu_custom_call.1} parent=5 // pred_fallthru
      _
    %p168 = scmp.le.s32.totalorder 1, %s9
    %p169 = scmp.lt.s32.totalorder %s9, 3
    %p170 = pnand %p168, %p169
    %p171 = pneg %p170
    // Predicated region
    $region29: #{tpu_custom_call.1} parent=5 // pred_check
      _
    $region30: #{tpu_custom_call.1} parent=5 // pred_check_branch
      %173 = sbr.rel (%p170) target = $region32
    $region31: #{tpu_custom_call.1} parent=5 // pred_region
      %s174 = ssub.s32 %s9, 1
      %p175 = scmp.lt.s32.totalorder %s18, 1
      %s176 = scalar_select %p175, %s18, 1
      %s177 = smul.addr %s176, 32
      %s178 = smul.addr %s177, 8
      %s179 = scalar_lea.vmem %s0, %s178
      %p180 = pneg %p47
      %p181 = pneg %p44
      %p182 = scmp.lt.s32.totalorder %s19, 0
      %s183 = scalar_select %p182, %s19, 0
      %s184 = smul.addr %s183, 8
      %s185 = scalar_lea.vmem %s1, %s184
      %p186 = pneg %p73
      %p187 = pneg %p70
      %p188 = scmp.lt.s32.totalorder %s19, 0
      %s189 = scalar_select %p188, %s19, 0
      %s190 = smul.addr %s189, 2
      %s191 = scalar_lea.vmem %s2, %s190
      %p192 = pneg %p99
      %p193 = pneg %p96
      %p194 = pneg %p127
      %p195 = pneg %p124
      %p196 = scmp.lt.s32.totalorder %s18, 1
      %s197 = scalar_select %p196, %s18, 1
      %p198 = scmp.lt.s32.totalorder %s19, 0
      %s199 = scalar_select %p198, %s19, 0
      %s200 = smul.addr %s197, 32
      %s201 = sadd.s32 %s199, %s200
      %s202 = smul.addr %s201, 8
      %s203 = scalar_lea.vmem %s3, %s202
      %p204 = scmp.lt.s32.totalorder %s18, 1
      %s205 = scalar_select %p204, %s18, 1
      %s206 = smul.addr %s205, 32
      %s207 = smul.addr %s206, 8
      %s208 = scalar_lea.vmem %s0, %s207
      %p209 = scmp.lt.s32.totalorder %s19, 0
      %s210 = scalar_select %p209, %s19, 0
      %s211 = smul.addr %s210, 8
      %s212 = scalar_lea.vmem %s1, %s211
      %p213 = scmp.lt.s32.totalorder %s19, 0
      %s214 = scalar_select %p213, %s19, 0
      %s215 = smul.addr %s214, 2
      %s216 = scalar_lea.vmem %s2, %s215
      %p217 = scmp.lt.s32.totalorder %s18, 1
      %s218 = scalar_select %p217, %s18, 1
      %p219 = scmp.lt.s32.totalorder %s19, 0
      %s220 = scalar_select %p219, %s19, 0
      %s221 = smul.addr %s218, 32
      %s222 = sadd.s32 %s220, %s221
      %s223 = smul.addr %s222, 8
      %s224 = scalar_lea.vmem %s3, %s223
      %v225 = vld [vmem:[%s208] sm:$0xff]
      %v226 = vld [vmem:[%s208 + $0x8] sm:$0xff]
      %v227 = vld [vmem:[%s208 + $0x10] sm:$0xff]
      %v228 = vld [vmem:[%s208 + $0x18] sm:$0xff]
      %v229 = vld [vmem:[%s208 + $0x20] sm:$0xff]
      %v230 = vld [vmem:[%s208 + $0x28] sm:$0xff]
      %v231 = vld [vmem:[%s208 + $0x30] sm:$0xff]
      %v232 = vld [vmem:[%s208 + $0x38] sm:$0xff]
      %v233 = vld [vmem:[%s208 + $0x40] sm:$0xff]
      %v234 = vld [vmem:[%s208 + $0x48] sm:$0xff]
      %v235 = vld [vmem:[%s208 + $0x50] sm:$0xff]
      %v236 = vld [vmem:[%s208 + $0x58] sm:$0xff]
      %v237 = vld [vmem:[%s208 + $0x60] sm:$0xff]
      %v238 = vld [vmem:[%s208 + $0x68] sm:$0xff]
      %v239 = vld [vmem:[%s208 + $0x70] sm:$0xff]
      %v240 = vld [vmem:[%s208 + $0x78] sm:$0xff]
      %v241 = vld [vmem:[%s208 + $0x80] sm:$0xff]
      %v242 = vld [vmem:[%s208 + $0x88] sm:$0xff]
      %v243 = vld [vmem:[%s208 + $0x90] sm:$0xff]
      %v244 = vld [vmem:[%s208 + $0x98] sm:$0xff]
      %v245 = vld [vmem:[%s208 + $0xa0] sm:$0xff]
      %v246 = vld [vmem:[%s208 + $0xa8] sm:$0xff]
      %v247 = vld [vmem:[%s208 + $0xb0] sm:$0xff]
      %v248 = vld [vmem:[%s208 + $0xb8] sm:$0xff]
      %v249 = vld [vmem:[%s208 + $0xc0] sm:$0xff]
      %v250 = vld [vmem:[%s208 + $0xc8] sm:$0xff]
      %v251 = vld [vmem:[%s208 + $0xd0] sm:$0xff]
      %v252 = vld [vmem:[%s208 + $0xd8] sm:$0xff]
      %v253 = vld [vmem:[%s208 + $0xe0] sm:$0xff]
      %v254 = vld [vmem:[%s208 + $0xe8] sm:$0xff]
      %v255 = vld [vmem:[%s208 + $0xf0] sm:$0xff]
      %v256 = vld [vmem:[%s208 + $0xf8] sm:$0xff]
      %v257 = vld [vmem:[%s212] sm:$0xff]
      %v258 = vld [vmem:[%s212 + $0x8] sm:$0xff]
      %v259 = vld [vmem:[%s212 + $0x10] sm:$0xff]
      %v260 = vld [vmem:[%s212 + $0x18] sm:$0xff]
      %v261 = vld [vmem:[%s212 + $0x20] sm:$0xf]
      %v278 = vrot.slane %v227, 1
      %v279 = vrot.slane %v225, 1
      %v280 = vrot.slane %v229, 1
      %v281 = vrot.slane %v231, 1
      %v282 = vrot.slane %v233, 1
      %v283 = vrot.slane %v235, 1
      %v284 = vrot.slane %v237, 1
      %v285 = vrot.slane %v239, 1
      %v286 = vrot.slane %v241, 1
      %v287 = vrot.slane %v243, 1
      %v288 = vrot.slane %v245, 1
      %v289 = vrot.slane %v247, 1
      %v290 = vrot.slane %v249, 1
      %v291 = vrot.slane %v251, 1
      %v292 = vrot.slane %v253, 1
      %v293 = vrot.slane %v255, 1
      %vm326 = vcmask 1040384
      %v327 = vrot.slane %v227, 7
      %v328 = vrot.slane %v228, 7
      %v329 = vsel %vm326, %v327, %v328
      %v330 = vrot.slane %v225, 7
      %v331 = vrot.slane %v226, 7
      %v332 = vsel %vm326, %v330, %v331
      %v333 = vrot.slane %v229, 7
      %v334 = vrot.slane %v230, 7
      %v335 = vsel %vm326, %v333, %v334
      %v336 = vrot.slane %v231, 7
      %v337 = vrot.slane %v232, 7
      %v338 = vsel %vm326, %v336, %v337
      %v339 = vrot.slane %v233, 7
      %v340 = vrot.slane %v234, 7
      %v341 = vsel %vm326, %v339, %v340
      %v342 = vrot.slane %v235, 7
      %v343 = vrot.slane %v236, 7
      %v344 = vsel %vm326, %v342, %v343
      %v345 = vrot.slane %v237, 7
      %v346 = vrot.slane %v238, 7
      %v347 = vsel %vm326, %v345, %v346
      %v348 = vrot.slane %v239, 7
      %v349 = vrot.slane %v240, 7
      %v350 = vsel %vm326, %v348, %v349
      %v351 = vrot.slane %v241, 7
      %v352 = vrot.slane %v242, 7
      %v353 = vsel %vm326, %v351, %v352
      %v354 = vrot.slane %v243, 7
      %v355 = vrot.slane %v244, 7
      %v356 = vsel %vm326, %v354, %v355
      %v357 = vrot.slane %v245, 7
      %v358 = vrot.slane %v246, 7
      %v359 = vsel %vm326, %v357, %v358
      %v360 = vrot.slane %v247, 7
      %v361 = vrot.slane %v248, 7
      %v362 = vsel %vm326, %v360, %v361
      %v363 = vrot.slane %v249, 7
      %v364 = vrot.slane %v250, 7
      %v365 = vsel %vm326, %v363, %v364
      %v366 = vrot.slane %v251, 7
      %v367 = vrot.slane %v252, 7
      %v368 = vsel %vm326, %v366, %v367
      %v369 = vrot.slane %v253, 7
      %v370 = vrot.slane %v254, 7
      %v371 = vsel %vm326, %v369, %v370
      %v372 = vrot.slane %v255, 7
      %v373 = vrot.slane %v256, 7
      %v374 = vsel %vm326, %v372, %v373
      %v406 = vsel %vm326, %v278, %v327
      %v407 = vsel %vm326, %v279, %v330
      %v408 = vsel %vm326, %v280, %v333
      %v409 = vsel %vm326, %v281, %v336
      %v410 = vsel %vm326, %v282, %v339
      %v411 = vsel %vm326, %v283, %v342
      %v412 = vsel %vm326, %v284, %v345
      %v413 = vsel %vm326, %v285, %v348
      %v414 = vsel %vm326, %v286, %v351
      %v415 = vsel %vm326, %v287, %v354
      %v416 = vsel %vm326, %v288, %v357
      %v417 = vsel %vm326, %v289, %v360
      %v418 = vsel %vm326, %v290, %v363
      %v419 = vsel %vm326, %v291, %v366
      %v420 = vsel %vm326, %v292, %v369
      %v421 = vsel %vm326, %v293, %v372
      %vm422 = vcmask 1046528
      %v423 = vrot.slane %v228, 1
      %v424 = vsel %vm422, %v278, %v423
      %v425 = vrot.slane %v226, 1
      %v426 = vsel %vm422, %v279, %v425
      %v427 = vrot.slane %v230, 1
      %v428 = vsel %vm422, %v280, %v427
      %v429 = vrot.slane %v232, 1
      %v430 = vsel %vm422, %v281, %v429
      %v431 = vrot.slane %v234, 1
      %v432 = vsel %vm422, %v282, %v431
      %v433 = vrot.slane %v236, 1
      %v434 = vsel %vm422, %v283, %v433
      %v435 = vrot.slane %v238, 1
      %v436 = vsel %vm422, %v284, %v435
      %v437 = vrot.slane %v240, 1
      %v438 = vsel %vm422, %v285, %v437
      %v439 = vrot.slane %v242, 1
      %v440 = vsel %vm422, %v286, %v439
      %v441 = vrot.slane %v244, 1
      %v442 = vsel %vm422, %v287, %v441
      %v443 = vrot.slane %v246, 1
      %v444 = vsel %vm422, %v288, %v443
      %v445 = vrot.slane %v248, 1
      %v446 = vsel %vm422, %v289, %v445
      %v447 = vrot.slane %v250, 1
      %v448 = vsel %vm422, %v290, %v447
      %v449 = vrot.slane %v252, 1
      %v450 = vsel %vm422, %v291, %v449
      %v451 = vrot.slane %v254, 1
      %v452 = vsel %vm422, %v292, %v451
      %v453 = vrot.slane %v256, 1
      %v454 = vsel %vm422, %v293, %v453
      %v487 = vsel %vm422, %v423, %v328
      %v488 = vsel %vm422, %v425, %v331
      %v489 = vsel %vm422, %v427, %v334
      %v490 = vsel %vm422, %v429, %v337
      %v491 = vsel %vm422, %v431, %v340
      %v492 = vsel %vm422, %v433, %v343
      %v493 = vsel %vm422, %v435, %v346
      %v494 = vsel %vm422, %v437, %v349
      %v495 = vsel %vm422, %v439, %v352
      %v496 = vsel %vm422, %v441, %v355
      %v497 = vsel %vm422, %v443, %v358
      %v498 = vsel %vm422, %v445, %v361
      %v499 = vsel %vm422, %v447, %v364
      %v500 = vsel %vm422, %v449, %v367
      %v501 = vsel %vm422, %v451, %v370
      %v502 = vsel %vm422, %v453, %v373
      %503 = vrot.lane.b32.xlu0 %v227, 4
      %v504 = vpop.permute.xlu0 %503
      %505 = vrot.lane.b32.xlu0 %v228, 4
      %v506 = vpop.permute.xlu0 %505
      %507 = vrot.lane.b32.xlu0 %v225, 4
      %v508 = vpop.permute.xlu0 %507
      %509 = vrot.lane.b32.xlu0 %v226, 4
      %v510 = vpop.permute.xlu0 %509
      %511 = vrot.lane.b32.xlu0 %v229, 4
      %v512 = vpop.permute.xlu0 %511
      %513 = vrot.lane.b32.xlu0 %v230, 4
      %v514 = vpop.permute.xlu0 %513
      %515 = vrot.lane.b32.xlu0 %v231, 4
      %v516 = vpop.permute.xlu0 %515
      %517 = vrot.lane.b32.xlu0 %v232, 4
      %v518 = vpop.permute.xlu0 %517
      %519 = vrot.lane.b32.xlu0 %v233, 4
      %v520 = vpop.permute.xlu0 %519
      %521 = vrot.lane.b32.xlu0 %v234, 4
      %v522 = vpop.permute.xlu0 %521
      %523 = vrot.lane.b32.xlu0 %v235, 4
      %v524 = vpop.permute.xlu0 %523
      %525 = vrot.lane.b32.xlu0 %v236, 4
      %v526 = vpop.permute.xlu0 %525
      %527 = vrot.lane.b32.xlu0 %v237, 4
      %v528 = vpop.permute.xlu0 %527
      %529 = vrot.lane.b32.xlu0 %v238, 4
      %v530 = vpop.permute.xlu0 %529
      %531 = vrot.lane.b32.xlu0 %v239, 4
      %v532 = vpop.permute.xlu0 %531
      %533 = vrot.lane.b32.xlu0 %v240, 4
      %v534 = vpop.permute.xlu0 %533
      %535 = vrot.lane.b32.xlu0 %v241, 4
      %v536 = vpop.permute.xlu0 %535
      %537 = vrot.lane.b32.xlu0 %v242, 4
      %v538 = vpop.permute.xlu0 %537
      %539 = vrot.lane.b32.xlu0 %v243, 4
      %v540 = vpop.permute.xlu0 %539
      %541 = vrot.lane.b32.xlu0 %v244, 4
      %v542 = vpop.permute.xlu0 %541
      %543 = vrot.lane.b32.xlu0 %v245, 4
      %v544 = vpop.permute.xlu0 %543
      %545 = vrot.lane.b32.xlu0 %v246, 4
      %v546 = vpop.permute.xlu0 %545
      %547 = vrot.lane.b32.xlu0 %v247, 4
      %v548 = vpop.permute.xlu0 %547
      %549 = vrot.lane.b32.xlu0 %v248, 4
      %v550 = vpop.permute.xlu0 %549
      %551 = vrot.lane.b32.xlu0 %v249, 4
      %v552 = vpop.permute.xlu0 %551
      %553 = vrot.lane.b32.xlu0 %v250, 4
      %v554 = vpop.permute.xlu0 %553
      %555 = vrot.lane.b32.xlu0 %v251, 4
      %v556 = vpop.permute.xlu0 %555
      %557 = vrot.lane.b32.xlu0 %v252, 4
      %v558 = vpop.permute.xlu0 %557
      %559 = vrot.lane.b32.xlu0 %v253, 4
      %v560 = vpop.permute.xlu0 %559
      %561 = vrot.lane.b32.xlu0 %v254, 4
      %v562 = vpop.permute.xlu0 %561
      %608 = vrot.lane.b32.xlu0 %v424, 8
      %v609 = vpop.permute.xlu0 %608
      %610 = vrot.lane.b32.xlu0 %v487, 8
      %v611 = vpop.permute.xlu0 %610
      %612 = vrot.lane.b32.xlu0 %v426, 8
      %v613 = vpop.permute.xlu0 %612
      %614 = vrot.lane.b32.xlu0 %v488, 8
      %v615 = vpop.permute.xlu0 %614
      %616 = vrot.lane.b32.xlu0 %v428, 8
      %v617 = vpop.permute.xlu0 %616
      %618 = vrot.lane.b32.xlu0 %v489, 8
      %v619 = vpop.permute.xlu0 %618
      %620 = vrot.lane.b32.xlu0 %v430, 8
      %v621 = vpop.permute.xlu0 %620
      %622 = vrot.lane.b32.xlu0 %v490, 8
      %v623 = vpop.permute.xlu0 %622
      %624 = vrot.lane.b32.xlu0 %v432, 8
      %v625 = vpop.permute.xlu0 %624
      %626 = vrot.lane.b32.xlu0 %v491, 8
      %v627 = vpop.permute.xlu0 %626
      %628 = vrot.lane.b32.xlu0 %v434, 8
      %v629 = vpop.permute.xlu0 %628
      %630 = vrot.lane.b32.xlu0 %v492, 8
      %v631 = vpop.permute.xlu0 %630
      %632 = vrot.lane.b32.xlu0 %v436, 8
      %v633 = vpop.permute.xlu0 %632
      %634 = vrot.lane.b32.xlu0 %v493, 8
      %v635 = vpop.permute.xlu0 %634
      %636 = vrot.lane.b32.xlu0 %v438, 8
      %v637 = vpop.permute.xlu0 %636
      %638 = vrot.lane.b32.xlu0 %v494, 8
      %v639 = vpop.permute.xlu0 %638
      %640 = vrot.lane.b32.xlu0 %v440, 8
      %v641 = vpop.permute.xlu0 %640
      %642 = vrot.lane.b32.xlu0 %v495, 8
      %v643 = vpop.permute.xlu0 %642
      %644 = vrot.lane.b32.xlu0 %v442, 8
      %v645 = vpop.permute.xlu0 %644
      %646 = vrot.lane.b32.xlu0 %v496, 8
      %v647 = vpop.permute.xlu0 %646
      %648 = vrot.lane.b32.xlu0 %v444, 8
      %v649 = vpop.permute.xlu0 %648
      %650 = vrot.lane.b32.xlu0 %v497, 8
      %v651 = vpop.permute.xlu0 %650
      %652 = vrot.lane.b32.xlu0 %v446, 8
      %v653 = vpop.permute.xlu0 %652
      %654 = vrot.lane.b32.xlu0 %v498, 8
      %v655 = vpop.permute.xlu0 %654
      %656 = vrot.lane.b32.xlu0 %v448, 8
      %v657 = vpop.permute.xlu0 %656
      %658 = vrot.lane.b32.xlu0 %v499, 8
      %v659 = vpop.permute.xlu0 %658
      %660 = vrot.lane.b32.xlu0 %v450, 8
      %v661 = vpop.permute.xlu0 %660
      %662 = vrot.lane.b32.xlu0 %v500, 8
      %v663 = vpop.permute.xlu0 %662
      %664 = vrot.lane.b32.xlu0 %v452, 8
      %v665 = vpop.permute.xlu0 %664
      %666 = vrot.lane.b32.xlu0 %v501, 8
      %v667 = vpop.permute.xlu0 %666
      %714 = vrot.lane.b32.xlu0 %v407, 12
      %v715 = vpop.permute.xlu0 %714
      %716 = vrot.lane.b32.xlu0 %v332, 12
      %v717 = vpop.permute.xlu0 %716
      %718 = vrot.lane.b32.xlu0 %v406, 12
      %v719 = vpop.permute.xlu0 %718
      %720 = vrot.lane.b32.xlu0 %v329, 12
      %v721 = vpop.permute.xlu0 %720
      %722 = vrot.lane.b32.xlu0 %v408, 12
      %v723 = vpop.permute.xlu0 %722
      %724 = vrot.lane.b32.xlu0 %v335, 12
      %v725 = vpop.permute.xlu0 %724
      %726 = vrot.lane.b32.xlu0 %v409, 12
      %v727 = vpop.permute.xlu0 %726
      %728 = vrot.lane.b32.xlu0 %v338, 12
      %v729 = vpop.permute.xlu0 %728
      %730 = vrot.lane.b32.xlu0 %v410, 12
      %v731 = vpop.permute.xlu0 %730
      %732 = vrot.lane.b32.xlu0 %v341, 12
      %v733 = vpop.permute.xlu0 %732
      %734 = vrot.lane.b32.xlu0 %v411, 12
      %v735 = vpop.permute.xlu0 %734
      %736 = vrot.lane.b32.xlu0 %v344, 12
      %v737 = vpop.permute.xlu0 %736
      %738 = vrot.lane.b32.xlu0 %v412, 12
      %v739 = vpop.permute.xlu0 %738
      %740 = vrot.lane.b32.xlu0 %v347, 12
      %v741 = vpop.permute.xlu0 %740
      %742 = vrot.lane.b32.xlu0 %v413, 12
      %v743 = vpop.permute.xlu0 %742
      %744 = vrot.lane.b32.xlu0 %v350, 12
      %v745 = vpop.permute.xlu0 %744
      %746 = vrot.lane.b32.xlu0 %v414, 12
      %v747 = vpop.permute.xlu0 %746
      %748 = vrot.lane.b32.xlu0 %v353, 12
      %v749 = vpop.permute.xlu0 %748
      %750 = vrot.lane.b32.xlu0 %v415, 12
      %v751 = vpop.permute.xlu0 %750
      %752 = vrot.lane.b32.xlu0 %v356, 12
      %v753 = vpop.permute.xlu0 %752
      %754 = vrot.lane.b32.xlu0 %v416, 12
      %v755 = vpop.permute.xlu0 %754
      %756 = vrot.lane.b32.xlu0 %v359, 12
      %v757 = vpop.permute.xlu0 %756
      %758 = vrot.lane.b32.xlu0 %v417, 12
      %v759 = vpop.permute.xlu0 %758
      %760 = vrot.lane.b32.xlu0 %v362, 12
      %v761 = vpop.permute.xlu0 %760
      %762 = vrot.lane.b32.xlu0 %v418, 12
      %v763 = vpop.permute.xlu0 %762
      %764 = vrot.lane.b32.xlu0 %v365, 12
      %v765 = vpop.permute.xlu0 %764
      %766 = vrot.lane.b32.xlu0 %v419, 12
      %v767 = vpop.permute.xlu0 %766
      %768 = vrot.lane.b32.xlu0 %v368, 12
      %v769 = vpop.permute.xlu0 %768
      %770 = vrot.lane.b32.xlu0 %v420, 12
      %v771 = vpop.permute.xlu0 %770
      %772 = vrot.lane.b32.xlu0 %v371, 12
      %v773 = vpop.permute.xlu0 %772
      %774 = vrot.lane.b32.xlu0 %v421, 12
      %v775 = vpop.permute.xlu0 %774
      %776 = vrot.lane.b32.xlu0 %v374, 12
      %v777 = vpop.permute.xlu0 %776
      %810 = vrot.lane.b32.xlu0 %v225, 16
      %v811 = vpop.permute.xlu0 %810
      %812 = vrot.lane.b32.xlu0 %v226, 16
      %v813 = vpop.permute.xlu0 %812
      %814 = vrot.lane.b32.xlu0 %v227, 16
      %v815 = vpop.permute.xlu0 %814
      %816 = vrot.lane.b32.xlu0 %v228, 16
      %v817 = vpop.permute.xlu0 %816
      %818 = vrot.lane.b32.xlu0 %v229, 16
      %v819 = vpop.permute.xlu0 %818
      %820 = vrot.lane.b32.xlu0 %v230, 16
      %v821 = vpop.permute.xlu0 %820
      %822 = vrot.lane.b32.xlu0 %v231, 16
      %v823 = vpop.permute.xlu0 %822
      %824 = vrot.lane.b32.xlu0 %v232, 16
      %v825 = vpop.permute.xlu0 %824
      %826 = vrot.lane.b32.xlu0 %v233, 16
      %v827 = vpop.permute.xlu0 %826
      %828 = vrot.lane.b32.xlu0 %v234, 16
      %v829 = vpop.permute.xlu0 %828
      %830 = vrot.lane.b32.xlu0 %v235, 16
      %v831 = vpop.permute.xlu0 %830
      %832 = vrot.lane.b32.xlu0 %v236, 16
      %v833 = vpop.permute.xlu0 %832
      %834 = vrot.lane.b32.xlu0 %v237, 16
      %v835 = vpop.permute.xlu0 %834
      %836 = vrot.lane.b32.xlu0 %v238, 16
      %v837 = vpop.permute.xlu0 %836
      %838 = vrot.lane.b32.xlu0 %v239, 16
      %v839 = vpop.permute.xlu0 %838
      %840 = vrot.lane.b32.xlu0 %v240, 16
      %v841 = vpop.permute.xlu0 %840
      %842 = vrot.lane.b32.xlu0 %v241, 16
      %v843 = vpop.permute.xlu0 %842
      %844 = vrot.lane.b32.xlu0 %v242, 16
      %v845 = vpop.permute.xlu0 %844
      %846 = vrot.lane.b32.xlu0 %v243, 16
      %v847 = vpop.permute.xlu0 %846
      %848 = vrot.lane.b32.xlu0 %v244, 16
      %v849 = vpop.permute.xlu0 %848
      %850 = vrot.lane.b32.xlu0 %v245, 16
      %v851 = vpop.permute.xlu0 %850
      %852 = vrot.lane.b32.xlu0 %v246, 16
      %v853 = vpop.permute.xlu0 %852
      %854 = vrot.lane.b32.xlu0 %v247, 16
      %v855 = vpop.permute.xlu0 %854
      %856 = vrot.lane.b32.xlu0 %v248, 16
      %v857 = vpop.permute.xlu0 %856
      %858 = vrot.lane.b32.xlu0 %v249, 16
      %v859 = vpop.permute.xlu0 %858
      %860 = vrot.lane.b32.xlu0 %v250, 16
      %v861 = vpop.permute.xlu0 %860
      %862 = vrot.lane.b32.xlu0 %v251, 16
      %v863 = vpop.permute.xlu0 %862
      %864 = vrot.lane.b32.xlu0 %v252, 16
      %v865 = vpop.permute.xlu0 %864
      %866 = vrot.lane.b32.xlu0 %v253, 16
      %v867 = vpop.permute.xlu0 %866
      %868 = vrot.lane.b32.xlu0 %v254, 16
      %v869 = vpop.permute.xlu0 %868
      %870 = vrot.lane.b32.xlu0 %v255, 16
      %v871 = vpop.permute.xlu0 %870
      %872 = vrot.lane.b32.xlu0 %v256, 16
      %v873 = vpop.permute.xlu0 %872
      %907 = vrot.lane.b32.xlu0 %v426, 20
      %v908 = vpop.permute.xlu0 %907
      %909 = vrot.lane.b32.xlu0 %v488, 20
      %v910 = vpop.permute.xlu0 %909
      %911 = vrot.lane.b32.xlu0 %v424, 20
      %v912 = vpop.permute.xlu0 %911
      %913 = vrot.lane.b32.xlu0 %v487, 20
      %v914 = vpop.permute.xlu0 %913
      %915 = vrot.lane.b32.xlu0 %v428, 20
      %v916 = vpop.permute.xlu0 %915
      %917 = vrot.lane.b32.xlu0 %v489, 20
      %v918 = vpop.permute.xlu0 %917
      %919 = vrot.lane.b32.xlu0 %v430, 20
      %v920 = vpop.permute.xlu0 %919
      %921 = vrot.lane.b32.xlu0 %v490, 20
      %v922 = vpop.permute.xlu0 %921
      %923 = vrot.lane.b32.xlu0 %v432, 20
      %v924 = vpop.permute.xlu0 %923
      %925 = vrot.lane.b32.xlu0 %v491, 20
      %v926 = vpop.permute.xlu0 %925
      %927 = vrot.lane.b32.xlu0 %v434, 20
      %v928 = vpop.permute.xlu0 %927
      %929 = vrot.lane.b32.xlu0 %v492, 20
      %v930 = vpop.permute.xlu0 %929
      %931 = vrot.lane.b32.xlu0 %v436, 20
      %v932 = vpop.permute.xlu0 %931
      %933 = vrot.lane.b32.xlu0 %v493, 20
      %v934 = vpop.permute.xlu0 %933
      %935 = vrot.lane.b32.xlu0 %v438, 20
      %v936 = vpop.permute.xlu0 %935
      %937 = vrot.lane.b32.xlu0 %v494, 20
      %v938 = vpop.permute.xlu0 %937
      %939 = vrot.lane.b32.xlu0 %v440, 20
      %v940 = vpop.permute.xlu0 %939
      %941 = vrot.lane.b32.xlu0 %v495, 20
      %v942 = vpop.permute.xlu0 %941
      %943 = vrot.lane.b32.xlu0 %v442, 20
      %v944 = vpop.permute.xlu0 %943
      %945 = vrot.lane.b32.xlu0 %v496, 20
      %v946 = vpop.permute.xlu0 %945
      %947 = vrot.lane.b32.xlu0 %v444, 20
      %v948 = vpop.permute.xlu0 %947
      %949 = vrot.lane.b32.xlu0 %v497, 20
      %v950 = vpop.permute.xlu0 %949
      %951 = vrot.lane.b32.xlu0 %v446, 20
      %v952 = vpop.permute.xlu0 %951
      %953 = vrot.lane.b32.xlu0 %v498, 20
      %v954 = vpop.permute.xlu0 %953
      %955 = vrot.lane.b32.xlu0 %v448, 20
      %v956 = vpop.permute.xlu0 %955
      %957 = vrot.lane.b32.xlu0 %v499, 20
      %v958 = vpop.permute.xlu0 %957
      %959 = vrot.lane.b32.xlu0 %v450, 20
      %v960 = vpop.permute.xlu0 %959
      %961 = vrot.lane.b32.xlu0 %v500, 20
      %v962 = vpop.permute.xlu0 %961
      %963 = vrot.lane.b32.xlu0 %v452, 20
      %v964 = vpop.permute.xlu0 %963
      %965 = vrot.lane.b32.xlu0 %v501, 20
      %v966 = vpop.permute.xlu0 %965
      %967 = vrot.lane.b32.xlu0 %v454, 20
      %v968 = vpop.permute.xlu0 %967
      %969 = vrot.lane.b32.xlu0 %v502, 20
      %v970 = vpop.permute.xlu0 %969
      %1003 = vrot.lane.b32.xlu0 %v406, 24
      %v1004 = vpop.permute.xlu0 %1003
      %1005 = vrot.lane.b32.xlu0 %v329, 24
      %v1006 = vpop.permute.xlu0 %1005
      %1007 = vrot.lane.b32.xlu0 %v408, 24
      %v1008 = vpop.permute.xlu0 %1007
      %1009 = vrot.lane.b32.xlu0 %v335, 24
      %v1010 = vpop.permute.xlu0 %1009
      %1011 = vrot.lane.b32.xlu0 %v409, 24
      %v1012 = vpop.permute.xlu0 %1011
      %1013 = vrot.lane.b32.xlu0 %v338, 24
      %v1014 = vpop.permute.xlu0 %1013
      %1015 = vrot.lane.b32.xlu0 %v410, 24
      %v1016 = vpop.permute.xlu0 %1015
      %1017 = vrot.lane.b32.xlu0 %v341, 24
      %v1018 = vpop.permute.xlu0 %1017
      %1019 = vrot.lane.b32.xlu0 %v411, 24
      %v1020 = vpop.permute.xlu0 %1019
      %1021 = vrot.lane.b32.xlu0 %v344, 24
      %v1022 = vpop.permute.xlu0 %1021
      %1023 = vrot.lane.b32.xlu0 %v412, 24
      %v1024 = vpop.permute.xlu0 %1023
      %1025 = vrot.lane.b32.xlu0 %v347, 24
      %v1026 = vpop.permute.xlu0 %1025
      %1027 = vrot.lane.b32.xlu0 %v413, 24
      %v1028 = vpop.permute.xlu0 %1027
      %1029 = vrot.lane.b32.xlu0 %v350, 24
      %v1030 = vpop.permute.xlu0 %1029
      %1031 = vrot.lane.b32.xlu0 %v414, 24
      %v1032 = vpop.permute.xlu0 %1031
      %1033 = vrot.lane.b32.xlu0 %v353, 24
      %v1034 = vpop.permute.xlu0 %1033
      %1035 = vrot.lane.b32.xlu0 %v415, 24
      %v1036 = vpop.permute.xlu0 %1035
      %1037 = vrot.lane.b32.xlu0 %v356, 24
      %v1038 = vpop.permute.xlu0 %1037
      %1039 = vrot.lane.b32.xlu0 %v416, 24
      %v1040 = vpop.permute.xlu0 %1039
      %1041 = vrot.lane.b32.xlu0 %v359, 24
      %v1042 = vpop.permute.xlu0 %1041
      %1043 = vrot.lane.b32.xlu0 %v417, 24
      %v1044 = vpop.permute.xlu0 %1043
      %1045 = vrot.lane.b32.xlu0 %v362, 24
      %v1046 = vpop.permute.xlu0 %1045
      %1047 = vrot.lane.b32.xlu0 %v418, 24
      %v1048 = vpop.permute.xlu0 %1047
      %1049 = vrot.lane.b32.xlu0 %v365, 24
      %v1050 = vpop.permute.xlu0 %1049
      %1051 = vrot.lane.b32.xlu0 %v419, 24
      %v1052 = vpop.permute.xlu0 %1051
      %1053 = vrot.lane.b32.xlu0 %v368, 24
      %v1054 = vpop.permute.xlu0 %1053
      %1055 = vrot.lane.b32.xlu0 %v420, 24
      %v1056 = vpop.permute.xlu0 %1055
      %1057 = vrot.lane.b32.xlu0 %v371, 24
      %v1058 = vpop.permute.xlu0 %1057
      %1059 = vrot.lane.b32.xlu0 %v421, 24
      %v1060 = vpop.permute.xlu0 %1059
      %1061 = vrot.lane.b32.xlu0 %v374, 24
      %v1062 = vpop.permute.xlu0 %1061
      %1093 = vrot.lane.b32.xlu0 %v227, 28
      %v1094 = vpop.permute.xlu0 %1093
      %1095 = vrot.lane.b32.xlu0 %v228, 28
      %v1096 = vpop.permute.xlu0 %1095
      %1097 = vrot.lane.b32.xlu0 %v229, 28
      %v1098 = vpop.permute.xlu0 %1097
      %1099 = vrot.lane.b32.xlu0 %v230, 28
      %v1100 = vpop.permute.xlu0 %1099
      %1101 = vrot.lane.b32.xlu0 %v231, 28
      %v1102 = vpop.permute.xlu0 %1101
      %1103 = vrot.lane.b32.xlu0 %v232, 28
      %v1104 = vpop.permute.xlu0 %1103
      %1105 = vrot.lane.b32.xlu0 %v233, 28
      %v1106 = vpop.permute.xlu0 %1105
      %1107 = vrot.lane.b32.xlu0 %v234, 28
      %v1108 = vpop.permute.xlu0 %1107
      %1109 = vrot.lane.b32.xlu0 %v235, 28
      %v1110 = vpop.permute.xlu0 %1109
      %1111 = vrot.lane.b32.xlu0 %v236, 28
      %v1112 = vpop.permute.xlu0 %1111
      %1113 = vrot.lane.b32.xlu0 %v237, 28
      %v1114 = vpop.permute.xlu0 %1113
      %1115 = vrot.lane.b32.xlu0 %v238, 28
      %v1116 = vpop.permute.xlu0 %1115
      %1117 = vrot.lane.b32.xlu0 %v239, 28
      %v1118 = vpop.permute.xlu0 %1117
      %1119 = vrot.lane.b32.xlu0 %v240, 28
      %v1120 = vpop.permute.xlu0 %1119
      %1121 = vrot.lane.b32.xlu0 %v241, 28
      %v1122 = vpop.permute.xlu0 %1121
      %1123 = vrot.lane.b32.xlu0 %v242, 28
      %v1124 = vpop.permute.xlu0 %1123
      %1125 = vrot.lane.b32.xlu0 %v243, 28
      %v1126 = vpop.permute.xlu0 %1125
      %1127 = vrot.lane.b32.xlu0 %v244, 28
      %v1128 = vpop.permute.xlu0 %1127
      %1129 = vrot.lane.b32.xlu0 %v245, 28
      %v1130 = vpop.permute.xlu0 %1129
      %1131 = vrot.lane.b32.xlu0 %v246, 28
      %v1132 = vpop.permute.xlu0 %1131
      %1133 = vrot.lane.b32.xlu0 %v247, 28
      %v1134 = vpop.permute.xlu0 %1133
      %1135 = vrot.lane.b32.xlu0 %v248, 28
      %v1136 = vpop.permute.xlu0 %1135
      %1137 = vrot.lane.b32.xlu0 %v249, 28
      %v1138 = vpop.permute.xlu0 %1137
      %1139 = vrot.lane.b32.xlu0 %v250, 28
      %v1140 = vpop.permute.xlu0 %1139
      %1141 = vrot.lane.b32.xlu0 %v251, 28
      %v1142 = vpop.permute.xlu0 %1141
      %1143 = vrot.lane.b32.xlu0 %v252, 28
      %v1144 = vpop.permute.xlu0 %1143
      %1145 = vrot.lane.b32.xlu0 %v253, 28
      %v1146 = vpop.permute.xlu0 %1145
      %1147 = vrot.lane.b32.xlu0 %v254, 28
      %v1148 = vpop.permute.xlu0 %1147
      %1149 = vrot.lane.b32.xlu0 %v255, 28
      %v1150 = vpop.permute.xlu0 %1149
      %1151 = vrot.lane.b32.xlu0 %v256, 28
      %v1152 = vpop.permute.xlu0 %1151
      %1183 = vrot.lane.b32.xlu0 %v424, 32
      %v1184 = vpop.permute.xlu0 %1183
      %1185 = vrot.lane.b32.xlu0 %v487, 32
      %v1186 = vpop.permute.xlu0 %1185
      %1187 = vrot.lane.b32.xlu0 %v428, 32
      %v1188 = vpop.permute.xlu0 %1187
      %1189 = vrot.lane.b32.xlu0 %v489, 32
      %v1190 = vpop.permute.xlu0 %1189
      %1191 = vrot.lane.b32.xlu0 %v430, 32
      %v1192 = vpop.permute.xlu0 %1191
      %1193 = vrot.lane.b32.xlu0 %v490, 32
      %v1194 = vpop.permute.xlu0 %1193
      %1195 = vrot.lane.b32.xlu0 %v432, 32
      %v1196 = vpop.permute.xlu0 %1195
      %1197 = vrot.lane.b32.xlu0 %v491, 32
      %v1198 = vpop.permute.xlu0 %1197
      %1199 = vrot.lane.b32.xlu0 %v434, 32
      %v1200 = vpop.permute.xlu0 %1199
      %1201 = vrot.lane.b32.xlu0 %v492, 32
      %v1202 = vpop.permute.xlu0 %1201
      %1203 = vrot.lane.b32.xlu0 %v436, 32
      %v1204 = vpop.permute.xlu0 %1203
      %1205 = vrot.lane.b32.xlu0 %v493, 32
      %v1206 = vpop.permute.xlu0 %1205
      %1207 = vrot.lane.b32.xlu0 %v438, 32
      %v1208 = vpop.permute.xlu0 %1207
      %1209 = vrot.lane.b32.xlu0 %v494, 32
      %v1210 = vpop.permute.xlu0 %1209
      %1211 = vrot.lane.b32.xlu0 %v440, 32
      %v1212 = vpop.permute.xlu0 %1211
      %1213 = vrot.lane.b32.xlu0 %v495, 32
      %v1214 = vpop.permute.xlu0 %1213
      %1215 = vrot.lane.b32.xlu0 %v442, 32
      %v1216 = vpop.permute.xlu0 %1215
      %1217 = vrot.lane.b32.xlu0 %v496, 32
      %v1218 = vpop.permute.xlu0 %1217
      %1219 = vrot.lane.b32.xlu0 %v444, 32
      %v1220 = vpop.permute.xlu0 %1219
      %1221 = vrot.lane.b32.xlu0 %v497, 32
      %v1222 = vpop.permute.xlu0 %1221
      %1223 = vrot.lane.b32.xlu0 %v446, 32
      %v1224 = vpop.permute.xlu0 %1223
      %1225 = vrot.lane.b32.xlu0 %v498, 32
      %v1226 = vpop.permute.xlu0 %1225
      %1227 = vrot.lane.b32.xlu0 %v448, 32
      %v1228 = vpop.permute.xlu0 %1227
      %1229 = vrot.lane.b32.xlu0 %v499, 32
      %v1230 = vpop.permute.xlu0 %1229
      %1231 = vrot.lane.b32.xlu0 %v450, 32
      %v1232 = vpop.permute.xlu0 %1231
      %1233 = vrot.lane.b32.xlu0 %v500, 32
      %v1234 = vpop.permute.xlu0 %1233
      %1235 = vrot.lane.b32.xlu0 %v452, 32
      %v1236 = vpop.permute.xlu0 %1235
      %1237 = vrot.lane.b32.xlu0 %v501, 32
      %v1238 = vpop.permute.xlu0 %1237
      %1239 = vrot.lane.b32.xlu0 %v454, 32
      %v1240 = vpop.permute.xlu0 %1239
      %1241 = vrot.lane.b32.xlu0 %v502, 32
      %v1242 = vpop.permute.xlu0 %1241
      %vm1273 = vcmask 31744
      %v1274 = vsel %vm1273, %v406, %v504
      %v1275 = vsel %vm1273, %v329, %v506
      %v1276 = vsel %vm1273, %v407, %v508
      %v1277 = vsel %vm1273, %v332, %v510
      %v1278 = vsel %vm1273, %v408, %v512
      %v1279 = vsel %vm1273, %v335, %v514
      %v1280 = vsel %vm1273, %v409, %v516
      %v1281 = vsel %vm1273, %v338, %v518
      %v1282 = vsel %vm1273, %v410, %v520
      %v1283 = vsel %vm1273, %v341, %v522
      %v1284 = vsel %vm1273, %v411, %v524
      %v1285 = vsel %vm1273, %v344, %v526
      %v1286 = vsel %vm1273, %v412, %v528
      %v1287 = vsel %vm1273, %v347, %v530
      %v1288 = vsel %vm1273, %v413, %v532
      %v1289 = vsel %vm1273, %v350, %v534
      %v1290 = vsel %vm1273, %v414, %v536
      %v1291 = vsel %vm1273, %v353, %v538
      %v1292 = vsel %vm1273, %v415, %v540
      %v1293 = vsel %vm1273, %v356, %v542
      %v1294 = vsel %vm1273, %v416, %v544
      %v1295 = vsel %vm1273, %v359, %v546
      %v1296 = vsel %vm1273, %v417, %v548
      %v1297 = vsel %vm1273, %v362, %v550
      %v1298 = vsel %vm1273, %v418, %v552
      %v1299 = vsel %vm1273, %v365, %v554
      %v1300 = vsel %vm1273, %v419, %v556
      %v1301 = vsel %vm1273, %v368, %v558
      %v1302 = vsel %vm1273, %v420, %v560
      %v1303 = vsel %vm1273, %v371, %v562
      %vm1304 = vcmask 64512
      %v1305 = vsel %vm1304, %v1274, %v609
      %v1306 = vsel %vm1304, %v1275, %v611
      %v1307 = vsel %vm1304, %v1276, %v613
      %v1308 = vsel %vm1304, %v1277, %v615
      %v1309 = vsel %vm1304, %v1278, %v617
      %v1310 = vsel %vm1304, %v1279, %v619
      %v1311 = vsel %vm1304, %v1280, %v621
      %v1312 = vsel %vm1304, %v1281, %v623
      %v1313 = vsel %vm1304, %v1282, %v625
      %v1314 = vsel %vm1304, %v1283, %v627
      %v1315 = vsel %vm1304, %v1284, %v629
      %v1316 = vsel %vm1304, %v1285, %v631
      %v1317 = vsel %vm1304, %v1286, %v633
      %v1318 = vsel %vm1304, %v1287, %v635
      %v1319 = vsel %vm1304, %v1288, %v637
      %v1320 = vsel %vm1304, %v1289, %v639
      %v1321 = vsel %vm1304, %v1290, %v641
      %v1322 = vsel %vm1304, %v1291, %v643
      %v1323 = vsel %vm1304, %v1292, %v645
      %v1324 = vsel %vm1304, %v1293, %v647
      %v1325 = vsel %vm1304, %v1294, %v649
      %v1326 = vsel %vm1304, %v1295, %v651
      %v1327 = vsel %vm1304, %v1296, %v653
      %v1328 = vsel %vm1304, %v1297, %v655
      %v1329 = vsel %vm1304, %v1298, %v657
      %v1330 = vsel %vm1304, %v1299, %v659
      %v1331 = vsel %vm1304, %v1300, %v661
      %v1332 = vsel %vm1304, %v1301, %v663
      %v1333 = vsel %vm1304, %v1302, %v665
      %v1334 = vsel %vm1304, %v1303, %v667
      %vm1335 = vcmask 97280
      %v1336 = vsel %vm1335, %v1305, %v715
      %v1337 = vsel %vm1335, %v1306, %v717
      %v1338 = vsel %vm1335, %v1307, %v719
      %v1339 = vsel %vm1335, %v1308, %v721
      %v1340 = vsel %vm1335, %v1305, %v723
      %v1341 = vsel %vm1335, %v1306, %v725
      %v1342 = vsel %vm1335, %v1309, %v727
      %v1343 = vsel %vm1335, %v1310, %v729
      %v1344 = vsel %vm1335, %v1311, %v731
      %v1345 = vsel %vm1335, %v1312, %v733
      %v1346 = vsel %vm1335, %v1313, %v735
      %v1347 = vsel %vm1335, %v1314, %v737
      %v1348 = vsel %vm1335, %v1315, %v739
      %v1349 = vsel %vm1335, %v1316, %v741
      %v1350 = vsel %vm1335, %v1317, %v743
      %v1351 = vsel %vm1335, %v1318, %v745
      %v1352 = vsel %vm1335, %v1319, %v747
      %v1353 = vsel %vm1335, %v1320, %v749
      %v1354 = vsel %vm1335, %v1321, %v751
      %v1355 = vsel %vm1335, %v1322, %v753
      %v1356 = vsel %vm1335, %v1323, %v755
      %v1357 = vsel %vm1335, %v1324, %v757
      %v1358 = vsel %vm1335, %v1325, %v759
      %v1359 = vsel %vm1335, %v1326, %v761
      %v1360 = vsel %vm1335, %v1327, %v763
      %v1361 = vsel %vm1335, %v1328, %v765
      %v1362 = vsel %vm1335, %v1329, %v767
      %v1363 = vsel %vm1335, %v1330, %v769
      %v1364 = vsel %vm1335, %v1331, %v771
      %v1365 = vsel %vm1335, %v1332, %v773
      %v1366 = vsel %vm1335, %v1333, %v775
      %v1367 = vsel %vm1335, %v1334, %v777
      %vm1368 = vcmask 130048
      %v1369 = vsel %vm1368, %v1336, %v811
      %v1370 = vsel %vm1368, %v1337, %v813
      %v1371 = vsel %vm1368, %v1338, %v815
      %v1372 = vsel %vm1368, %v1339, %v817
      %v1373 = vsel %vm1368, %v1340, %v819
      %v1374 = vsel %vm1368, %v1341, %v821
      %v1375 = vsel %vm1368, %v1342, %v823
      %v1376 = vsel %vm1368, %v1343, %v825
      %v1377 = vsel %vm1368, %v1344, %v827
      %v1378 = vsel %vm1368, %v1345, %v829
      %v1379 = vsel %vm1368, %v1346, %v831
      %v1380 = vsel %vm1368, %v1347, %v833
      %v1381 = vsel %vm1368, %v1348, %v835
      %v1382 = vsel %vm1368, %v1349, %v837
      %v1383 = vsel %vm1368, %v1350, %v839
      %v1384 = vsel %vm1368, %v1351, %v841
      %v1385 = vsel %vm1368, %v1352, %v843
      %v1386 = vsel %vm1368, %v1353, %v845
      %v1387 = vsel %vm1368, %v1354, %v847
      %v1388 = vsel %vm1368, %v1355, %v849
      %v1389 = vsel %vm1368, %v1356, %v851
      %v1390 = vsel %vm1368, %v1357, %v853
      %v1391 = vsel %vm1368, %v1358, %v855
      %v1392 = vsel %vm1368, %v1359, %v857
      %v1393 = vsel %vm1368, %v1360, %v859
      %v1394 = vsel %vm1368, %v1361, %v861
      %v1395 = vsel %vm1368, %v1362, %v863
      %v1396 = vsel %vm1368, %v1363, %v865
      %v1397 = vsel %vm1368, %v1364, %v867
      %v1398 = vsel %vm1368, %v1365, %v869
      %v1399 = vsel %vm1368, %v1366, %v871
      %v1400 = vsel %vm1368, %v1367, %v873
      %vm1401 = vcmask 162816
      %v1402 = vsel %vm1401, %v1369, %v908
      %v1403 = vsel %vm1401, %v1370, %v910
      %v1404 = vsel %vm1401, %v1371, %v912
      %v1405 = vsel %vm1401, %v1372, %v914
      %v1406 = vsel %vm1401, %v1373, %v916
      %v1407 = vsel %vm1401, %v1374, %v918
      %v1408 = vsel %vm1401, %v1375, %v920
      %v1409 = vsel %vm1401, %v1376, %v922
      %v1410 = vsel %vm1401, %v1377, %v924
      %v1411 = vsel %vm1401, %v1378, %v926
      %v1412 = vsel %vm1401, %v1379, %v928
      %v1413 = vsel %vm1401, %v1380, %v930
      %v1414 = vsel %vm1401, %v1381, %v932
      %v1415 = vsel %vm1401, %v1382, %v934
      %v1416 = vsel %vm1401, %v1383, %v936
      %v1417 = vsel %vm1401, %v1384, %v938
      %v1418 = vsel %vm1401, %v1385, %v940
      %v1419 = vsel %vm1401, %v1386, %v942
      %v1420 = vsel %vm1401, %v1387, %v944
      %v1421 = vsel %vm1401, %v1388, %v946
      %v1422 = vsel %vm1401, %v1389, %v948
      %v1423 = vsel %vm1401, %v1390, %v950
      %v1424 = vsel %vm1401, %v1391, %v952
      %v1425 = vsel %vm1401, %v1392, %v954
      %v1426 = vsel %vm1401, %v1393, %v956
      %v1427 = vsel %vm1401, %v1394, %v958
      %v1428 = vsel %vm1401, %v1395, %v960
      %v1429 = vsel %vm1401, %v1396, %v962
      %v1430 = vsel %vm1401, %v1397, %v964
      %v1431 = vsel %vm1401, %v1398, %v966
      %v1432 = vsel %vm1401, %v1399, %v968
      %v1433 = vsel %vm1401, %v1400, %v970
      %vm1434 = vcmask 195584
      %v1435 = vsel %vm1434, %v1402, %v1004
      %v1436 = vsel %vm1434, %v1403, %v1006
      %v1437 = vsel %vm1434, %v1404, %v1008
      %v1438 = vsel %vm1434, %v1405, %v1010
      %v1439 = vsel %vm1434, %v1406, %v1012
      %v1440 = vsel %vm1434, %v1407, %v1014
      %v1441 = vsel %vm1434, %v1408, %v1016
      %v1442 = vsel %vm1434, %v1409, %v1018
      %v1443 = vsel %vm1434, %v1410, %v1020
      %v1444 = vsel %vm1434, %v1411, %v1022
      %v1445 = vsel %vm1434, %v1412, %v1024
      %v1446 = vsel %vm1434, %v1413, %v1026
      %v1447 = vsel %vm1434, %v1414, %v1028
      %v1448 = vsel %vm1434, %v1415, %v1030
      %v1449 = vsel %vm1434, %v1416, %v1032
      %v1450 = vsel %vm1434, %v1417, %v1034
      %v1451 = vsel %vm1434, %v1418, %v1036
      %v1452 = vsel %vm1434, %v1419, %v1038
      %v1453 = vsel %vm1434, %v1420, %v1040
      %v1454 = vsel %vm1434, %v1421, %v1042
      %v1455 = vsel %vm1434, %v1422, %v1044
      %v1456 = vsel %vm1434, %v1423, %v1046
      %v1457 = vsel %vm1434, %v1424, %v1048
      %v1458 = vsel %vm1434, %v1425, %v1050
      %v1459 = vsel %vm1434, %v1426, %v1052
      %v1460 = vsel %vm1434, %v1427, %v1054
      %v1461 = vsel %vm1434, %v1428, %v1056
      %v1462 = vsel %vm1434, %v1429, %v1058
      %v1463 = vsel %vm1434, %v1430, %v1060
      %v1464 = vsel %vm1434, %v1431, %v1062
      %v1465 = vsel %vm1434, %v1432, %v1056
      %v1466 = vsel %vm1434, %v1433, %v1058
      %vm1467 = vcmask 228352
      %v1468 = vsel %vm1467, %v1435, %v1094
      %v1469 = vsel %vm1467, %v1436, %v1096
      %v1470 = vsel %vm1467, %v1437, %v1098
      %v1471 = vsel %vm1467, %v1438, %v1100
      %v1472 = vsel %vm1467, %v1439, %v1102
      %v1473 = vsel %vm1467, %v1440, %v1104
      %v1474 = vsel %vm1467, %v1441, %v1106
      %v1475 = vsel %vm1467, %v1442, %v1108
      %v1476 = vsel %vm1467, %v1443, %v1110
      %v1477 = vsel %vm1467, %v1444, %v1112
      %v1478 = vsel %vm1467, %v1445, %v1114
      %v1479 = vsel %vm1467, %v1446, %v1116
      %v1480 = vsel %vm1467, %v1447, %v1118
      %v1481 = vsel %vm1467, %v1448, %v1120
      %v1482 = vsel %vm1467, %v1449, %v1122
      %v1483 = vsel %vm1467, %v1450, %v1124
      %v1484 = vsel %vm1467, %v1451, %v1126
      %v1485 = vsel %vm1467, %v1452, %v1128
      %v1486 = vsel %vm1467, %v1453, %v1130
      %v1487 = vsel %vm1467, %v1454, %v1132
      %v1488 = vsel %vm1467, %v1455, %v1134
      %v1489 = vsel %vm1467, %v1456, %v1136
      %v1490 = vsel %vm1467, %v1457, %v1138
      %v1491 = vsel %vm1467, %v1458, %v1140
      %v1492 = vsel %vm1467, %v1459, %v1142
      %v1493 = vsel %vm1467, %v1460, %v1144
      %v1494 = vsel %vm1467, %v1461, %v1146
      %v1495 = vsel %vm1467, %v1462, %v1148
      %v1496 = vsel %vm1467, %v1463, %v1150
      %v1497 = vsel %vm1467, %v1464, %v1152
      %v1498 = vsel %vm1467, %v1465, %v1146
      %v1499 = vsel %vm1467, %v1466, %v1148
      %vm1500 = vcmask 261120
      %v1501 = vsel %vm1500, %v1468, %v1184
      %v1502 = vsel %vm1500, %v1469, %v1186
      %v1503 = vsel %vm1500, %v1470, %v1188
      %v1504 = vsel %vm1500, %v1471, %v1190
      %v1505 = vsel %vm1500, %v1472, %v1192
      %v1506 = vsel %vm1500, %v1473, %v1194
      %v1507 = vsel %vm1500, %v1474, %v1196
      %v1508 = vsel %vm1500, %v1475, %v1198
      %v1509 = vsel %vm1500, %v1476, %v1200
      %v1510 = vsel %vm1500, %v1477, %v1202
      %v1511 = vsel %vm1500, %v1478, %v1204
      %v1512 = vsel %vm1500, %v1479, %v1206
      %v1513 = vsel %vm1500, %v1480, %v1208
      %v1514 = vsel %vm1500, %v1481, %v1210
      %v1515 = vsel %vm1500, %v1482, %v1212
      %v1516 = vsel %vm1500, %v1483, %v1214
      %v1517 = vsel %vm1500, %v1484, %v1216
      %v1518 = vsel %vm1500, %v1485, %v1218
      %v1519 = vsel %vm1500, %v1486, %v1220
      %v1520 = vsel %vm1500, %v1487, %v1222
      %v1521 = vsel %vm1500, %v1488, %v1224
      %v1522 = vsel %vm1500, %v1489, %v1226
      %v1523 = vsel %vm1500, %v1490, %v1228
      %v1524 = vsel %vm1500, %v1491, %v1230
      %v1525 = vsel %vm1500, %v1492, %v1232
      %v1526 = vsel %vm1500, %v1493, %v1234
      %v1527 = vsel %vm1500, %v1494, %v1236
      %v1528 = vsel %vm1500, %v1495, %v1238
      %v1529 = vsel %vm1500, %v1496, %v1240
      %v1530 = vsel %vm1500, %v1497, %v1242
      %v1531 = vsel %vm1500, %v1498, %v1236
      %v1532 = vsel %vm1500, %v1499, %v1238
      %vm1533 = vcmask 293888
      %v1535 = vsel %vm1533, %v1501, 0
      %v1538 = vsel %vm1533, %v1502, 0
      %v1541 = vsel %vm1533, %v1503, 0
      %v1544 = vsel %vm1533, %v1504, 0
      %v1547 = vsel %vm1533, %v1505, 0
      %v1550 = vsel %vm1533, %v1506, 0
      %v1553 = vsel %vm1533, %v1507, 0
      %v1556 = vsel %vm1533, %v1508, 0
      %v1559 = vsel %vm1533, %v1509, 0
      %v1562 = vsel %vm1533, %v1510, 0
      %v1565 = vsel %vm1533, %v1511, 0
      %v1568 = vsel %vm1533, %v1512, 0
      %v1571 = vsel %vm1533, %v1513, 0
      %v1574 = vsel %vm1533, %v1514, 0
      %v1577 = vsel %vm1533, %v1515, 0
      %v1580 = vsel %vm1533, %v1516, 0
      %v1583 = vsel %vm1533, %v1517, 0
      %v1586 = vsel %vm1533, %v1518, 0
      %v1589 = vsel %vm1533, %v1519, 0
      %v1592 = vsel %vm1533, %v1520, 0
      %v1595 = vsel %vm1533, %v1521, 0
      %v1598 = vsel %vm1533, %v1522, 0
      %v1601 = vsel %vm1533, %v1523, 0
      %v1604 = vsel %vm1533, %v1524, 0
      %v1607 = vsel %vm1533, %v1525, 0
      %v1610 = vsel %vm1533, %v1526, 0
      %v1613 = vsel %vm1533, %v1527, 0
      %v1616 = vsel %vm1533, %v1528, 0
      %v1619 = vsel %vm1533, %v1529, 0
      %v1622 = vsel %vm1533, %v1530, 0
      %v1625 = vsel %vm1533, %v1531, 0
      %v1628 = vsel %vm1533, %v1532, 0
      %vm1630 = vcmask 1043456
      %v1632 = vsel %vm1630, %v261, 0
      %1634 = vmatprep.subr.mxu0 0.0
      %1635 = vmatpush1.msra.mxu0 0.0
      %1636 = vmatprep.subr.mxu0 0.0
      %1637 = vmatpush1.msra.mxu0 0.0
      %1638 = vmatprep.subr.mxu0 0.0
      %1639 = vmatpush1.msra.mxu0 0.0
      %1640 = vmatprep.subr.mxu0 0.0
      %1641 = vmatpush1.msra.mxu0 0.0
      %1642 = vmatprep.subr.mxu0 0.0
      %1643 = vmatpush1.msra.mxu0 0.0
      %1644 = vmatprep.subr.mxu0 0.0
      %1645 = vmatpush1.msra.mxu0 0.0
      %1646 = vmatprep.subr.mxu0 0.0
      %1647 = vmatpush1.msra.mxu0 0.0
      %1648 = vmatprep.subr.mxu0 0.0
      %1649 = vmatpush1.msra.mxu0 0.0
      %1650 = vmatprep.subr.mxu0 0.0
      %1651 = vmatpush1.msra.mxu0 0.0
      %1652 = vmatprep.subr.mxu0 0.0
      %1653 = vmatpush1.msra.mxu0 0.0
      %1654 = vmatprep.subr.mxu0 0.0
      %1655 = vmatpush1.msra.mxu0 0.0
      %1656 = vmatprep.subr.mxu0 0.0
      %1657 = vmatpush1.msra.mxu0 %v1632
      %1658 = vmatprep.subr.mxu0 0.0
      %1659 = vmatpush1.msra.mxu0 %v260
      %1660 = vmatprep.subr.mxu0 0.0
      %1661 = vmatpush1.msra.mxu0 %v259
      %1662 = vmatprep.subr.mxu0 0.0
      %1663 = vmatpush1.msra.mxu0 %v258
      %1664 = vmatprep.subr.mxu0 0.0
      %1665 = vmatpush1.msra.mxu0 %v257
      %1666 = vmatprep.subr.mxu0 0.0
      %1667 = vmatpush2.msra.mxu0 0.0
      %1668 = vmatprep.subr.mxu0 0.0
      %1669 = vmatpush2.msra.mxu0 0.0
      %1670 = vmatprep.subr.mxu0 0.0
      %1671 = vmatpush2.msra.mxu0 0.0
      %1672 = vmatprep.subr.mxu0 0.0
      %1673 = vmatpush2.msra.mxu0 0.0
      %1674 = vmatprep.subr.mxu0 0.0
      %1675 = vmatpush2.msra.mxu0 0.0
      %1676 = vmatprep.subr.mxu0 0.0
      %1677 = vmatpush2.msra.mxu0 0.0
      %1678 = vmatprep.subr.mxu0 0.0
      %1679 = vmatpush2.msra.mxu0 0.0
      %1680 = vmatprep.subr.mxu0 0.0
      %1681 = vmatpush2.msra.mxu0 0.0
      %1682 = vmatprep.subr.mxu0 0.0
      %1683 = vmatpush2.msra.mxu0 0.0
      %1684 = vmatprep.subr.mxu0 0.0
      %1685 = vmatpush2.msra.mxu0 0.0
      %1686 = vmatprep.subr.mxu0 0.0
      %1687 = vmatpush2.msra.mxu0 0.0
      %1688 = vmatprep.subr.mxu0 0.0
      %1689 = vmatpush2.msra.mxu0 0.0
      %1690 = vmatprep.subr.mxu0 0.0
      %1691 = vmatpush2.msra.mxu0 0.0
      %1692 = vmatprep.subr.mxu0 0.0
      %1693 = vmatpush2.msra.mxu0 0.0
      %1694 = vmatprep.subr.mxu0 0.0
      %1695 = vmatpush2.msra.mxu0 0.0
      %1696 = vmatprep.subr.mxu0 0.0
      %1697 = vmatpush2.msra.mxu0 0.0
      %1698 = vmatprep.mubr.f32.mxu0 0.0
      %1699 = vmatmul.mubr.f32.gmra.mxu0 %v1535
      %v1700 = vpop.f32.mrf.mxu0
      %v1701 = vadd.f32 0.0, %v1700
      %v1702 = vpop.f32.mrf.mxu0
      %1703 = vmatprep.mubr.f32.mxu0 0.0
      %1704 = vmatmul.mubr.f32.gmra.mxu0 %v1538
      %v1705 = vpop.f32.mrf.mxu0
      %v1706 = vadd.f32 0.0, %v1705
      %v1707 = vpop.f32.mrf.mxu0
      %1708 = vmatprep.mubr.f32.mxu0 0.0
      %1709 = vmatmul.mubr.f32.gmra.mxu0 %v1541
      %v1710 = vpop.f32.mrf.mxu0
      %v1711 = vadd.f32 0.0, %v1710
      %v1712 = vpop.f32.mrf.mxu0
      %1713 = vmatprep.mubr.f32.mxu0 0.0
      %1714 = vmatmul.mubr.f32.gmra.mxu0 %v1544
      %v1715 = vpop.f32.mrf.mxu0
      %v1716 = vadd.f32 0.0, %v1715
      %v1717 = vpop.f32.mrf.mxu0
      %1718 = vmatprep.mubr.f32.mxu0 0.0
      %1719 = vmatmul.mubr.f32.gmra.mxu0 %v1547
      %v1720 = vpop.f32.mrf.mxu0
      %v1721 = vadd.f32 0.0, %v1720
      %v1722 = vpop.f32.mrf.mxu0
      %1723 = vmatprep.mubr.f32.mxu0 0.0
      %1724 = vmatmul.mubr.f32.gmra.mxu0 %v1550
      %v1725 = vpop.f32.mrf.mxu0
      %v1726 = vadd.f32 0.0, %v1725
      %v1727 = vpop.f32.mrf.mxu0
      %1728 = vmatprep.mubr.f32.mxu0 0.0
      %1729 = vmatmul.mubr.f32.gmra.mxu0 %v1553
      %v1730 = vpop.f32.mrf.mxu0
      %v1731 = vadd.f32 0.0, %v1730
      %v1732 = vpop.f32.mrf.mxu0
      %1733 = vmatprep.mubr.f32.mxu0 0.0
      %1734 = vmatmul.mubr.f32.gmra.mxu0 %v1556
      %v1735 = vpop.f32.mrf.mxu0
      %v1736 = vadd.f32 0.0, %v1735
      %v1737 = vpop.f32.mrf.mxu0
      %1738 = vmatprep.mubr.f32.mxu0 0.0
      %1739 = vmatmul.mubr.f32.gmra.mxu0 %v1559
      %v1740 = vpop.f32.mrf.mxu0
      %v1741 = vadd.f32 0.0, %v1740
      %v1742 = vpop.f32.mrf.mxu0
      %1743 = vmatprep.mubr.f32.mxu0 0.0
      %1744 = vmatmul.mubr.f32.gmra.mxu0 %v1562
      %v1745 = vpop.f32.mrf.mxu0
      %v1746 = vadd.f32 0.0, %v1745
      %v1747 = vpop.f32.mrf.mxu0
      %1748 = vmatprep.mubr.f32.mxu0 0.0
      %1749 = vmatmul.mubr.f32.gmra.mxu0 %v1565
      %v1750 = vpop.f32.mrf.mxu0
      %v1751 = vadd.f32 0.0, %v1750
      %v1752 = vpop.f32.mrf.mxu0
      %1753 = vmatprep.mubr.f32.mxu0 0.0
      %1754 = vmatmul.mubr.f32.gmra.mxu0 %v1568
      %v1755 = vpop.f32.mrf.mxu0
      %v1756 = vadd.f32 0.0, %v1755
      %v1757 = vpop.f32.mrf.mxu0
      %1758 = vmatprep.mubr.f32.mxu0 0.0
      %1759 = vmatmul.mubr.f32.gmra.mxu0 %v1571
      %v1760 = vpop.f32.mrf.mxu0
      %v1761 = vadd.f32 0.0, %v1760
      %v1762 = vpop.f32.mrf.mxu0
      %1763 = vmatprep.mubr.f32.mxu0 0.0
      %1764 = vmatmul.mubr.f32.gmra.mxu0 %v1574
      %v1765 = vpop.f32.mrf.mxu0
      %v1766 = vadd.f32 0.0, %v1765
      %v1767 = vpop.f32.mrf.mxu0
      %1768 = vmatprep.mubr.f32.mxu0 0.0
      %1769 = vmatmul.mubr.f32.gmra.mxu0 %v1577
      %v1770 = vpop.f32.mrf.mxu0
      %v1771 = vadd.f32 0.0, %v1770
      %v1772 = vpop.f32.mrf.mxu0
      %1773 = vmatprep.mubr.f32.mxu0 0.0
      %1774 = vmatmul.mubr.f32.gmra.mxu0 %v1580
      %v1775 = vpop.f32.mrf.mxu0
      %v1776 = vadd.f32 0.0, %v1775
      %v1777 = vpop.f32.mrf.mxu0
      %1778 = vmatprep.mubr.f32.mxu0 0.0
      %1779 = vmatmul.mubr.f32.gmra.mxu0 %v1583
      %v1780 = vpop.f32.mrf.mxu0
      %v1781 = vadd.f32 0.0, %v1780
      %v1782 = vpop.f32.mrf.mxu0
      %1783 = vmatprep.mubr.f32.mxu0 0.0
      %1784 = vmatmul.mubr.f32.gmra.mxu0 %v1586
      %v1785 = vpop.f32.mrf.mxu0
      %v1786 = vadd.f32 0.0, %v1785
      %v1787 = vpop.f32.mrf.mxu0
      %1788 = vmatprep.mubr.f32.mxu0 0.0
      %1789 = vmatmul.mubr.f32.gmra.mxu0 %v1589
      %v1790 = vpop.f32.mrf.mxu0
      %v1791 = vadd.f32 0.0, %v1790
      %v1792 = vpop.f32.mrf.mxu0
      %1793 = vmatprep.mubr.f32.mxu0 0.0
      %1794 = vmatmul.mubr.f32.gmra.mxu0 %v1592
      %v1795 = vpop.f32.mrf.mxu0
      %v1796 = vadd.f32 0.0, %v1795
      %v1797 = vpop.f32.mrf.mxu0
      %1798 = vmatprep.mubr.f32.mxu0 0.0
      %1799 = vmatmul.mubr.f32.gmra.mxu0 %v1595
      %v1800 = vpop.f32.mrf.mxu0
      %v1801 = vadd.f32 0.0, %v1800
      %v1802 = vpop.f32.mrf.mxu0
      %1803 = vmatprep.mubr.f32.mxu0 0.0
      %1804 = vmatmul.mubr.f32.gmra.mxu0 %v1598
      %v1805 = vpop.f32.mrf.mxu0
      %v1806 = vadd.f32 0.0, %v1805
      %v1807 = vpop.f32.mrf.mxu0
      %1808 = vmatprep.mubr.f32.mxu0 0.0
      %1809 = vmatmul.mubr.f32.gmra.mxu0 %v1601
      %v1810 = vpop.f32.mrf.mxu0
      %v1811 = vadd.f32 0.0, %v1810
      %v1812 = vpop.f32.mrf.mxu0
      %1813 = vmatprep.mubr.f32.mxu0 0.0
      %1814 = vmatmul.mubr.f32.gmra.mxu0 %v1604
      %v1815 = vpop.f32.mrf.mxu0
      %v1816 = vadd.f32 0.0, %v1815
      %v1817 = vpop.f32.mrf.mxu0
      %1818 = vmatprep.mubr.f32.mxu0 0.0
      %1819 = vmatmul.mubr.f32.gmra.mxu0 %v1607
      %v1820 = vpop.f32.mrf.mxu0
      %v1821 = vadd.f32 0.0, %v1820
      %v1822 = vpop.f32.mrf.mxu0
      %1823 = vmatprep.mubr.f32.mxu0 0.0
      %1824 = vmatmul.mubr.f32.gmra.mxu0 %v1610
      %v1825 = vpop.f32.mrf.mxu0
      %v1826 = vadd.f32 0.0, %v1825
      %v1827 = vpop.f32.mrf.mxu0
      %1828 = vmatprep.mubr.f32.mxu0 0.0
      %1829 = vmatmul.mubr.f32.gmra.mxu0 %v1613
      %v1830 = vpop.f32.mrf.mxu0
      %v1831 = vadd.f32 0.0, %v1830
      %v1832 = vpop.f32.mrf.mxu0
      %1833 = vmatprep.mubr.f32.mxu0 0.0
      %1834 = vmatmul.mubr.f32.gmra.mxu0 %v1616
      %v1835 = vpop.f32.mrf.mxu0
      %v1836 = vadd.f32 0.0, %v1835
      %v1837 = vpop.f32.mrf.mxu0
      %1838 = vmatprep.mubr.f32.mxu0 0.0
      %1839 = vmatmul.mubr.f32.gmra.mxu0 %v1619
      %v1840 = vpop.f32.mrf.mxu0
      %v1841 = vadd.f32 0.0, %v1840
      %v1842 = vpop.f32.mrf.mxu0
      %1843 = vmatprep.mubr.f32.mxu0 0.0
      %1844 = vmatmul.mubr.f32.gmra.mxu0 %v1622
      %v1845 = vpop.f32.mrf.mxu0
      %v1846 = vadd.f32 0.0, %v1845
      %v1847 = vpop.f32.mrf.mxu0
      %1848 = vmatprep.mubr.f32.mxu0 0.0
      %1849 = vmatmul.mubr.f32.gmra.mxu0 %v1625
      %v1850 = vpop.f32.mrf.mxu0
      %v1851 = vadd.f32 0.0, %v1850
      %v1852 = vpop.f32.mrf.mxu0
      %1853 = vmatprep.mubr.f32.mxu0 0.0
      %1854 = vmatmul.mubr.f32.gmra.mxu0 %v1628
      %v1855 = vpop.f32.mrf.mxu0
      %v1856 = vadd.f32 0.0, %v1855
      %v1857 = vpop.f32.mrf.mxu0
      %1858 = vdwg.mxu0
      %v1859 = vld [vmem:[%s216] sm:$0x3]
      %v1860 = vsel %vm1304, %v1701, 0.0
      %v1861 = vsel %vm1304, %v1706, 0.0
      %v1862 = vadd.f32 %v1860, %v1861
      %v1863 = vsel %vm1304, %v1711, 0.0
      %v1864 = vadd.f32 %v1862, %v1863
      %v1865 = vsel %vm1304, %v1716, 0.0
      %v1866 = vadd.f32 %v1864, %v1865
      %v1867 = vsel %vm1304, %v1721, 0.0
      %v1868 = vadd.f32 %v1866, %v1867
      %v1869 = vsel %vm1304, %v1726, 0.0
      %v1870 = vadd.f32 %v1868, %v1869
      %v1871 = vsel %vm1304, %v1731, 0.0
      %v1872 = vadd.f32 %v1870, %v1871
      %v1873 = vsel %vm1304, %v1736, 0.0
      %v1874 = vadd.f32 %v1872, %v1873
      %v1875 = vsel %vm1304, %v1741, 0.0
      %v1876 = vadd.f32 %v1874, %v1875
      %v1877 = vsel %vm1304, %v1746, 0.0
      %v1878 = vadd.f32 %v1876, %v1877
      %v1879 = vsel %vm1304, %v1751, 0.0
      %v1880 = vadd.f32 %v1878, %v1879
      %v1881 = vsel %vm1304, %v1756, 0.0
      %v1882 = vadd.f32 %v1880, %v1881
      %v1883 = vsel %vm1304, %v1761, 0.0
      %v1884 = vadd.f32 %v1882, %v1883
      %v1885 = vsel %vm1304, %v1766, 0.0
      %v1886 = vadd.f32 %v1884, %v1885
      %v1887 = vsel %vm1304, %v1771, 0.0
      %v1888 = vadd.f32 %v1886, %v1887
      %v1889 = vsel %vm1304, %v1776, 0.0
      %v1890 = vadd.f32 %v1888, %v1889
      %v1891 = vsel %vm1304, %v1781, 0.0
      %v1892 = vadd.f32 %v1890, %v1891
      %v1893 = vsel %vm1304, %v1786, 0.0
      %v1894 = vadd.f32 %v1892, %v1893
      %v1895 = vsel %vm1304, %v1791, 0.0
      %v1896 = vadd.f32 %v1894, %v1895
      %v1897 = vsel %vm1304, %v1796, 0.0
      %v1898 = vadd.f32 %v1896, %v1897
      %v1899 = vsel %vm1304, %v1801, 0.0
      %v1900 = vadd.f32 %v1898, %v1899
      %v1901 = vsel %vm1304, %v1806, 0.0
      %v1902 = vadd.f32 %v1900, %v1901
      %v1903 = vsel %vm1304, %v1811, 0.0
      %v1904 = vadd.f32 %v1902, %v1903
      %v1905 = vsel %vm1304, %v1816, 0.0
      %v1906 = vadd.f32 %v1904, %v1905
      %v1907 = vsel %vm1304, %v1821, 0.0
      %v1908 = vadd.f32 %v1906, %v1907
      %v1909 = vsel %vm1304, %v1826, 0.0
      %v1910 = vadd.f32 %v1908, %v1909
      %v1911 = vsel %vm1304, %v1831, 0.0
      %v1912 = vadd.f32 %v1910, %v1911
      %v1913 = vsel %vm1304, %v1836, 0.0
      %v1914 = vadd.f32 %v1912, %v1913
      %v1915 = vsel %vm1304, %v1841, 0.0
      %v1916 = vadd.f32 %v1914, %v1915
      %v1917 = vsel %vm1304, %v1846, 0.0
      %v1918 = vadd.f32 %v1916, %v1917
      %v1919 = vsel %vm1304, %v1851, 0.0
      %v1920 = vadd.f32 %v1918, %v1919
      %v1921 = vsel %vm1304, %v1856, 0.0
      %v1922 = vadd.f32 %v1920, %v1921
      %v1923 = vrot.slane %v1922, 4
      %v1924 = vadd.f32 %v1922, %v1923
      %v1925 = vrot.slane %v1924, 2
      %v1926 = vadd.f32 %v1924, %v1925
      %v1927 = vrot.slane %v1926, 1
      %v1928 = vadd.f32 %v1926, %v1927
      %v1929 = vrcp.pop 256.0
      %v1930 = vmul.f32 %v1928, %v1929
      %v1931 = vsub.f32 %v1701, %v1930
      %v1932 = vsub.f32 %v1706, %v1930
      %v1933 = vsub.f32 %v1711, %v1930
      %v1934 = vsub.f32 %v1716, %v1930
      %v1935 = vsub.f32 %v1721, %v1930
      %v1936 = vsub.f32 %v1726, %v1930
      %v1937 = vsub.f32 %v1731, %v1930
      %v1938 = vsub.f32 %v1736, %v1930
      %v1939 = vsub.f32 %v1741, %v1930
      %v1940 = vsub.f32 %v1746, %v1930
      %v1941 = vsub.f32 %v1751, %v1930
      %v1942 = vsub.f32 %v1756, %v1930
      %v1943 = vsub.f32 %v1761, %v1930
      %v1944 = vsub.f32 %v1766, %v1930
      %v1945 = vsub.f32 %v1771, %v1930
      %v1946 = vsub.f32 %v1776, %v1930
      %v1947 = vsub.f32 %v1781, %v1930
      %v1948 = vsub.f32 %v1786, %v1930
      %v1949 = vsub.f32 %v1791, %v1930
      %v1950 = vsub.f32 %v1796, %v1930
      %v1951 = vsub.f32 %v1801, %v1930
      %v1952 = vsub.f32 %v1806, %v1930
      %v1953 = vsub.f32 %v1811, %v1930
      %v1954 = vsub.f32 %v1816, %v1930
      %v1955 = vsub.f32 %v1821, %v1930
      %v1956 = vsub.f32 %v1826, %v1930
      %v1957 = vsub.f32 %v1831, %v1930
      %v1958 = vsub.f32 %v1836, %v1930
      %v1959 = vsub.f32 %v1841, %v1930
      %v1960 = vsub.f32 %v1846, %v1930
      %v1961 = vsub.f32 %v1851, %v1930
      %v1962 = vsub.f32 %v1856, %v1930
      %v1963 = vmul.f32 %v1931, %v1931
      %v1964 = vmul.f32 %v1932, %v1932
      %v1965 = vmul.f32 %v1933, %v1933
      %v1966 = vmul.f32 %v1934, %v1934
      %v1967 = vmul.f32 %v1935, %v1935
      %v1968 = vmul.f32 %v1936, %v1936
      %v1969 = vmul.f32 %v1937, %v1937
      %v1970 = vmul.f32 %v1938, %v1938
      %v1971 = vmul.f32 %v1939, %v1939
      %v1972 = vmul.f32 %v1940, %v1940
      %v1973 = vmul.f32 %v1941, %v1941
      %v1974 = vmul.f32 %v1942, %v1942
      %v1975 = vmul.f32 %v1943, %v1943
      %v1976 = vmul.f32 %v1944, %v1944
      %v1977 = vmul.f32 %v1945, %v1945
      %v1978 = vmul.f32 %v1946, %v1946
      %v1979 = vmul.f32 %v1947, %v1947
      %v1980 = vmul.f32 %v1948, %v1948
      %v1981 = vmul.f32 %v1949, %v1949
      %v1982 = vmul.f32 %v1950, %v1950
      %v1983 = vmul.f32 %v1951, %v1951
      %v1984 = vmul.f32 %v1952, %v1952
      %v1985 = vmul.f32 %v1953, %v1953
      %v1986 = vmul.f32 %v1954, %v1954
      %v1987 = vmul.f32 %v1955, %v1955
      %v1988 = vmul.f32 %v1956, %v1956
      %v1989 = vmul.f32 %v1957, %v1957
      %v1990 = vmul.f32 %v1958, %v1958
      %v1991 = vmul.f32 %v1959, %v1959
      %v1992 = vmul.f32 %v1960, %v1960
      %v1993 = vmul.f32 %v1961, %v1961
      %v1994 = vmul.f32 %v1962, %v1962
      %v1995 = vsel %vm1304, %v1963, 0.0
      %v1996 = vsel %vm1304, %v1964, 0.0
      %v1997 = vadd.f32 %v1995, %v1996
      %v1998 = vsel %vm1304, %v1965, 0.0
      %v1999 = vadd.f32 %v1997, %v1998
      %v2000 = vsel %vm1304, %v1966, 0.0
      %v2001 = vadd.f32 %v1999, %v2000
      %v2002 = vsel %vm1304, %v1967, 0.0
      %v2003 = vadd.f32 %v2001, %v2002
      %v2004 = vsel %vm1304, %v1968, 0.0
      %v2005 = vadd.f32 %v2003, %v2004
      %v2006 = vsel %vm1304, %v1969, 0.0
      %v2007 = vadd.f32 %v2005, %v2006
      %v2008 = vsel %vm1304, %v1970, 0.0
      %v2009 = vadd.f32 %v2007, %v2008
      %v2010 = vsel %vm1304, %v1971, 0.0
      %v2011 = vadd.f32 %v2009, %v2010
      %v2012 = vsel %vm1304, %v1972, 0.0
      %v2013 = vadd.f32 %v2011, %v2012
      %v2014 = vsel %vm1304, %v1973, 0.0
      %v2015 = vadd.f32 %v2013, %v2014
      %v2016 = vsel %vm1304, %v1974, 0.0
      %v2017 = vadd.f32 %v2015, %v2016
      %v2018 = vsel %vm1304, %v1975, 0.0
      %v2019 = vadd.f32 %v2017, %v2018
      %v2020 = vsel %vm1304, %v1976, 0.0
      %v2021 = vadd.f32 %v2019, %v2020
      %v2022 = vsel %vm1304, %v1977, 0.0
      %v2023 = vadd.f32 %v2021, %v2022
      %v2024 = vsel %vm1304, %v1978, 0.0
      %v2025 = vadd.f32 %v2023, %v2024
      %v2026 = vsel %vm1304, %v1979, 0.0
      %v2027 = vadd.f32 %v2025, %v2026
      %v2028 = vsel %vm1304, %v1980, 0.0
      %v2029 = vadd.f32 %v2027, %v2028
      %v2030 = vsel %vm1304, %v1981, 0.0
      %v2031 = vadd.f32 %v2029, %v2030
      %v2032 = vsel %vm1304, %v1982, 0.0
      %v2033 = vadd.f32 %v2031, %v2032
      %v2034 = vsel %vm1304, %v1983, 0.0
      %v2035 = vadd.f32 %v2033, %v2034
      %v2036 = vsel %vm1304, %v1984, 0.0
      %v2037 = vadd.f32 %v2035, %v2036
      %v2038 = vsel %vm1304, %v1985, 0.0
      %v2039 = vadd.f32 %v2037, %v2038
      %v2040 = vsel %vm1304, %v1986, 0.0
      %v2041 = vadd.f32 %v2039, %v2040
      %v2042 = vsel %vm1304, %v1987, 0.0
      %v2043 = vadd.f32 %v2041, %v2042
      %v2044 = vsel %vm1304, %v1988, 0.0
      %v2045 = vadd.f32 %v2043, %v2044
      %v2046 = vsel %vm1304, %v1989, 0.0
      %v2047 = vadd.f32 %v2045, %v2046
      %v2048 = vsel %vm1304, %v1990, 0.0
      %v2049 = vadd.f32 %v2047, %v2048
      %v2050 = vsel %vm1304, %v1991, 0.0
      %v2051 = vadd.f32 %v2049, %v2050
      %v2052 = vsel %vm1304, %v1992, 0.0
      %v2053 = vadd.f32 %v2051, %v2052
      %v2054 = vsel %vm1304, %v1993, 0.0
      %v2055 = vadd.f32 %v2053, %v2054
      %v2056 = vsel %vm1304, %v1994, 0.0
      %v2057 = vadd.f32 %v2055, %v2056
      %v2058 = vrot.slane %v2057, 4
      %v2059 = vadd.f32 %v2057, %v2058
      %v2060 = vrot.slane %v2059, 2
      %v2061 = vadd.f32 %v2059, %v2060
      %v2062 = vrot.slane %v2061, 1
      %v2063 = vadd.f32 %v2061, %v2062
      %v2064 = vmul.f32 %v2063, %v1929
      %v2065 = vadd.f32 %v2064, 1e-05
      %v2066 = vrsqrt.pop %v2065
      %v2067 = vmul.f32 %v1859, %v2066
      %v2068 = vlaneseq
      %v2069 = vshrl.u32 %v2068, 7
      %v2070 = vsub.s32 0, %v2069
      %v2071 = vrot.slane %v2067, %v2070
      %v2072 = vmul.f32 %v1931, %v2071
      %v2073 = vmul.f32 %v1932, %v2071
      %v2074 = vmul.f32 %v1933, %v2071
      %v2075 = vmul.f32 %v1934, %v2071
      %v2076 = vmul.f32 %v1935, %v2071
      %v2077 = vmul.f32 %v1936, %v2071
      %v2078 = vmul.f32 %v1937, %v2071
      %v2079 = vmul.f32 %v1938, %v2071
      %v2080 = vmul.f32 %v1939, %v2071
      %v2081 = vmul.f32 %v1940, %v2071
      %v2082 = vmul.f32 %v1941, %v2071
      %v2083 = vmul.f32 %v1942, %v2071
      %v2084 = vmul.f32 %v1943, %v2071
      %v2085 = vmul.f32 %v1944, %v2071
      %v2086 = vmul.f32 %v1945, %v2071
      %v2087 = vmul.f32 %v1946, %v2071
      %v2088 = vmul.f32 %v1947, %v2071
      %v2089 = vmul.f32 %v1948, %v2071
      %v2090 = vmul.f32 %v1949, %v2071
      %v2091 = vmul.f32 %v1950, %v2071
      %v2092 = vmul.f32 %v1951, %v2071
      %v2093 = vmul.f32 %v1952, %v2071
      %v2094 = vmul.f32 %v1953, %v2071
      %v2095 = vmul.f32 %v1954, %v2071
      %v2096 = vmul.f32 %v1955, %v2071
      %v2097 = vmul.f32 %v1956, %v2071
      %v2098 = vmul.f32 %v1957, %v2071
      %v2099 = vmul.f32 %v1958, %v2071
      %v2100 = vmul.f32 %v1959, %v2071
      %v2101 = vmul.f32 %v1960, %v2071
      %v2102 = vmul.f32 %v1961, %v2071
      %v2103 = vmul.f32 %v1962, %v2071
      %v2104 = vlaneseq
      %v2105 = vshrl.u32 %v2104, 7
      %v2106 = vsub.s32 1, %v2105
      %v2107 = vrot.slane %v1859, %v2106
      %v2108 = vadd.f32 %v2072, %v2107
      %v2109 = vadd.f32 %v2073, %v2107
      %v2110 = vadd.f32 %v2074, %v2107
      %v2111 = vadd.f32 %v2075, %v2107
      %v2112 = vadd.f32 %v2076, %v2107
      %v2113 = vadd.f32 %v2077, %v2107
      %v2114 = vadd.f32 %v2078, %v2107
      %v2115 = vadd.f32 %v2079, %v2107
      %v2116 = vadd.f32 %v2080, %v2107
      %v2117 = vadd.f32 %v2081, %v2107
      %v2118 = vadd.f32 %v2082, %v2107
      %v2119 = vadd.f32 %v2083, %v2107
      %v2120 = vadd.f32 %v2084, %v2107
      %v2121 = vadd.f32 %v2085, %v2107
      %v2122 = vadd.f32 %v2086, %v2107
      %v2123 = vadd.f32 %v2087, %v2107
      %v2124 = vadd.f32 %v2088, %v2107
      %v2125 = vadd.f32 %v2089, %v2107
      %v2126 = vadd.f32 %v2090, %v2107
      %v2127 = vadd.f32 %v2091, %v2107
      %v2128 = vadd.f32 %v2092, %v2107
      %v2129 = vadd.f32 %v2093, %v2107
      %v2130 = vadd.f32 %v2094, %v2107
      %v2131 = vadd.f32 %v2095, %v2107
      %v2132 = vadd.f32 %v2096, %v2107
      %v2133 = vadd.f32 %v2097, %v2107
      %v2134 = vadd.f32 %v2098, %v2107
      %v2135 = vadd.f32 %v2099, %v2107
      %v2136 = vadd.f32 %v2100, %v2107
      %v2137 = vadd.f32 %v2101, %v2107
      %v2138 = vadd.f32 %v2102, %v2107
      %v2139 = vadd.f32 %v2103, %v2107
      %v2140 = vmul.f32 %v2108, 0.01
      %v2141 = vmul.f32 %v2109, 0.01
      %v2142 = vmul.f32 %v2110, 0.01
      %v2143 = vmul.f32 %v2111, 0.01
      %v2144 = vmul.f32 %v2112, 0.01
      %v2145 = vmul.f32 %v2113, 0.01
      %v2146 = vmul.f32 %v2114, 0.01
      %v2147 = vmul.f32 %v2115, 0.01
      %v2148 = vmul.f32 %v2116, 0.01
      %v2149 = vmul.f32 %v2117, 0.01
      %v2150 = vmul.f32 %v2118, 0.01
      %v2151 = vmul.f32 %v2119, 0.01
      %v2152 = vmul.f32 %v2120, 0.01
      %v2153 = vmul.f32 %v2121, 0.01
      %v2154 = vmul.f32 %v2122, 0.01
      %v2155 = vmul.f32 %v2123, 0.01
      %v2156 = vmul.f32 %v2124, 0.01
      %v2157 = vmul.f32 %v2125, 0.01
      %v2158 = vmul.f32 %v2126, 0.01
      %v2159 = vmul.f32 %v2127, 0.01
      %v2160 = vmul.f32 %v2128, 0.01
      %v2161 = vmul.f32 %v2129, 0.01
      %v2162 = vmul.f32 %v2130, 0.01
      %v2163 = vmul.f32 %v2131, 0.01
      %v2164 = vmul.f32 %v2132, 0.01
      %v2165 = vmul.f32 %v2133, 0.01
      %v2166 = vmul.f32 %v2134, 0.01
      %v2167 = vmul.f32 %v2135, 0.01
      %v2168 = vmul.f32 %v2136, 0.01
      %v2169 = vmul.f32 %v2137, 0.01
      %v2170 = vmul.f32 %v2138, 0.01
      %v2171 = vmul.f32 %v2139, 0.01
      %v2172 = vmax.f32 %v2108, %v2140
      %v2173 = vmax.f32 %v2109, %v2141
      %v2174 = vmax.f32 %v2110, %v2142
      %v2175 = vmax.f32 %v2111, %v2143
      %v2176 = vmax.f32 %v2112, %v2144
      %v2177 = vmax.f32 %v2113, %v2145
      %v2178 = vmax.f32 %v2114, %v2146
      %v2179 = vmax.f32 %v2115, %v2147
      %v2180 = vmax.f32 %v2116, %v2148
      %v2181 = vmax.f32 %v2117, %v2149
      %v2182 = vmax.f32 %v2118, %v2150
      %v2183 = vmax.f32 %v2119, %v2151
      %v2184 = vmax.f32 %v2120, %v2152
      %v2185 = vmax.f32 %v2121, %v2153
      %v2186 = vmax.f32 %v2122, %v2154
      %v2187 = vmax.f32 %v2123, %v2155
      %v2188 = vmax.f32 %v2124, %v2156
      %v2189 = vmax.f32 %v2125, %v2157
      %v2190 = vmax.f32 %v2126, %v2158
      %v2191 = vmax.f32 %v2127, %v2159
      %v2192 = vmax.f32 %v2128, %v2160
      %v2193 = vmax.f32 %v2129, %v2161
      %v2194 = vmax.f32 %v2130, %v2162
      %v2195 = vmax.f32 %v2131, %v2163
      %v2196 = vmax.f32 %v2132, %v2164
      %v2197 = vmax.f32 %v2133, %v2165
      %v2198 = vmax.f32 %v2134, %v2166
      %v2199 = vmax.f32 %v2135, %v2167
      %v2200 = vmax.f32 %v2136, %v2168
      %v2201 = vmax.f32 %v2137, %v2169
      %v2202 = vmax.f32 %v2138, %v2170
      %v2203 = vmax.f32 %v2139, %v2171
      %2204 = vst.msk [vmem:[%s224] sm:$0xff] %vm1304, %v2172
      %2205 = vst.msk [vmem:[%s224 + $0x8] sm:$0xff] %vm1304, %v2173
      %2206 = vst.msk [vmem:[%s224 + $0x10] sm:$0xff] %vm1304, %v2174
      %2207 = vst.msk [vmem:[%s224 + $0x18] sm:$0xff] %vm1304, %v2175
      %2208 = vst.msk [vmem:[%s224 + $0x20] sm:$0xff] %vm1304, %v2176
      %2209 = vst.msk [vmem:[%s224 + $0x28] sm:$0xff] %vm1304, %v2177
      %2210 = vst.msk [vmem:[%s224 + $0x30] sm:$0xff] %vm1304, %v2178
      %2211 = vst.msk [vmem:[%s224 + $0x38] sm:$0xff] %vm1304, %v2179
      %2212 = vst.msk [vmem:[%s224 + $0x40] sm:$0xff] %vm1304, %v2180
      %2213 = vst.msk [vmem:[%s224 + $0x48] sm:$0xff] %vm1304, %v2181
      %2214 = vst.msk [vmem:[%s224 + $0x50] sm:$0xff] %vm1304, %v2182
      %2215 = vst.msk [vmem:[%s224 + $0x58] sm:$0xff] %vm1304, %v2183
      %2216 = vst.msk [vmem:[%s224 + $0x60] sm:$0xff] %vm1304, %v2184
      %2217 = vst.msk [vmem:[%s224 + $0x68] sm:$0xff] %vm1304, %v2185
      %2218 = vst.msk [vmem:[%s224 + $0x70] sm:$0xff] %vm1304, %v2186
      %2219 = vst.msk [vmem:[%s224 + $0x78] sm:$0xff] %vm1304, %v2187
      %2220 = vst.msk [vmem:[%s224 + $0x80] sm:$0xff] %vm1304, %v2188
      %2221 = vst.msk [vmem:[%s224 + $0x88] sm:$0xff] %vm1304, %v2189
      %2222 = vst.msk [vmem:[%s224 + $0x90] sm:$0xff] %vm1304, %v2190
      %2223 = vst.msk [vmem:[%s224 + $0x98] sm:$0xff] %vm1304, %v2191
      %2224 = vst.msk [vmem:[%s224 + $0xa0] sm:$0xff] %vm1304, %v2192
      %2225 = vst.msk [vmem:[%s224 + $0xa8] sm:$0xff] %vm1304, %v2193
      %2226 = vst.msk [vmem:[%s224 + $0xb0] sm:$0xff] %vm1304, %v2194
      %2227 = vst.msk [vmem:[%s224 + $0xb8] sm:$0xff] %vm1304, %v2195
      %2228 = vst.msk [vmem:[%s224 + $0xc0] sm:$0xff] %vm1304, %v2196
      %2229 = vst.msk [vmem:[%s224 + $0xc8] sm:$0xff] %vm1304, %v2197
      %2230 = vst.msk [vmem:[%s224 + $0xd0] sm:$0xff] %vm1304, %v2198
      %2231 = vst.msk [vmem:[%s224 + $0xd8] sm:$0xff] %vm1304, %v2199
      %2232 = vst.msk [vmem:[%s224 + $0xe0] sm:$0xff] %vm1304, %v2200
      %2233 = vst.msk [vmem:[%s224 + $0xe8] sm:$0xff] %vm1304, %v2201
      %2234 = vst.msk [vmem:[%s224 + $0xf0] sm:$0xff] %vm1304, %v2202
      %2235 = vst.msk [vmem:[%s224 + $0xf8] sm:$0xff] %vm1304, %v2203
      %p2236 = scmp.lt.s32.totalorder %s18, 1
      %s2237 = scalar_select %p2236, %s18, 1
      %p2238 = scmp.lt.s32.totalorder %s19, 0
      %s2239 = scalar_select %p2238, %s19, 0
      %s2240 = smul.addr %s2237, 32
      %s2241 = sadd.s32 %s2239, %s2240
      %s2242 = smul.addr %s2241, 8
      %s2243 = scalar_lea.vmem %s3, %s2242
      // Predicated region
      $region33: #{tpu_custom_call.1} parent=31 // pred_check
        %p2244 = pneg %p124
      $region34: #{tpu_custom_call.1} parent=31 // pred_check_branch
        %2246 = sbr.rel (%p2244) target = $region36
      $region35: #{tpu_custom_call.1} parent=31 // pred_region
        _
      $region36: #{tpu_custom_call.1} parent=31 // pred_fallthru
        _
    $region32: #{tpu_custom_call.1} parent=5 // pred_fallthru
      _
    %p2247 = scmp.le.s32.totalorder 2, %s9
    // Predicated region
    $region37: #{tpu_custom_call.1} parent=5 // pred_check
      %p2248 = pneg %p2247
    $region38: #{tpu_custom_call.1} parent=5 // pred_check_branch
      %2250 = sbr.rel (%p2248) target = $region40
    $region39: #{tpu_custom_call.1} parent=5 // pred_region
      %s2251 = ssub.s32 %s9, 2
      // Predicated region
      $region41: #{tpu_custom_call.1} parent=39 // pred_check
        %p2252 = pneg %p130
      $region42: #{tpu_custom_call.1} parent=39 // pred_check_branch
        %2254 = sbr.rel (%p2252) target = $region44
      $region43: #{tpu_custom_call.1} parent=39 // pred_region
        %p2255 = scmp.lt.s32.totalorder %s20, 1
        %s2256 = scalar_select %p2255, %s20, 1
        %p2257 = scmp.lt.s32.totalorder %s21, 0
        %s2258 = scalar_select %p2257, %s21, 0
        %s2259 = smul.addr %s2256, 32
        %s2260 = sadd.s32 %s2258, %s2259
        %s2261 = smul.addr %s2260, 8
        %s2262 = scalar_lea.vmem %s3, %s2261
      $region44: #{tpu_custom_call.1} parent=39 // pred_fallthru
        _
    $region40: #{tpu_custom_call.1} parent=5 // pred_fallthru
      _
  $region6: #{tpu_custom_call.1} parent=0 // loop_footer
    %s13 = sadd.s32 1, %s9
  $region7: #{tpu_custom_call.1} parent=0 // loop_footer_branch
    %8 = sbr.rel target = $region3
  $region8: #{tpu_custom_call.1} parent=0 // loop_exit
    _

</llo_original>
